<compile_context>
chip_gen: v7x
topology: tpu7x:2x2x1
jax: 0.10.0
libtpu: 0.0.40
codegen_flags: <defaults>
</compile_context>

<pallas_src>
import jax
import jax.numpy as jnp
from jax.experimental import pallas as pl
from jax.experimental.pallas import tpu as pltpu

NEG_SLOPE = 0.01   # nn.LeakyReLU default
BN_EPS = 1e-5      # nn.BatchNorm1d default

CHANNELS = [6, 32, 128, 128, 32, 16]   # MeshConv in/out channel chain
OUT_DIM = 3
CIN_PAD = 16       # pad 6 input channels to a bf16-sublane-friendly 16 (zeros)
HEAD_PAD = 128     # pad the 3 head outputs to a lane-dense 128-wide slab


# ---------------------------------------------------------------------------
# Single fused kernel: entire MeshNet forward, everything VMEM-resident.
# ---------------------------------------------------------------------------
def _meshnet_kernel(adj_ref, x_ref,
                    w1_ref, b1_ref, w2_ref, b2_ref, w3_ref, b3_ref,
                    w4_ref, b4_ref, w5_ref, b5_ref,
                    wh_ref, bh_ref, o_ref):
    a = adj_ref[...]                      # (N, N) bf16
    h = x_ref[...]                        # (N, CIN_PAD) bf16

    def conv_wide_out(h, w_ref, b_ref):
        # cout >= cin: A @ (h @ W') keeps the big N-contraction matmul
        # writing cout (wide) output lanes on the MXU.
        t = jnp.dot(h, w_ref[...], preferred_element_type=jnp.float32)
        z = jnp.dot(a, t.astype(jnp.bfloat16),
                    preferred_element_type=jnp.float32)
        z = z + b_ref[...]                              # BN already folded in
        z = jnp.where(z >= 0, z, NEG_SLOPE * z)         # LeakyReLU, f32 epilogue
        return z.astype(jnp.bfloat16)

    def conv_wide_in(h, w_ref, b_ref):
        # cin > cout: (A @ h) @ W' keeps the big N-contraction matmul
        # writing cin (wide) output lanes on the MXU.
        t = jnp.dot(a, h, preferred_element_type=jnp.float32)
        z = jnp.dot(t.astype(jnp.bfloat16), w_ref[...],
                    preferred_element_type=jnp.float32)
        z = z + b_ref[...]
        z = jnp.where(z >= 0, z, NEG_SLOPE * z)
        return z.astype(jnp.bfloat16)

    h = conv_wide_out(h, w1_ref, b1_ref)   # 6(->16 padded) -> 32
    h = conv_wide_out(h, w2_ref, b2_ref)   # 32  -> 128
    h = conv_wide_out(h, w3_ref, b3_ref)   # 128 -> 128
    h = conv_wide_in(h, w4_ref, b4_ref)    # 128 -> 32
    h = conv_wide_in(h, w5_ref, b5_ref)    # 32  -> 16

    # Head nn.Linear(16, 3), padded to 128 output lanes -> unmasked stores.
    o_ref[...] = (jnp.dot(h, wh_ref[...], preferred_element_type=jnp.float32)
                  + bh_ref[...])


# ---------------------------------------------------------------------------
# Host-side BN folding and the fused forward pass.
# ---------------------------------------------------------------------------
def _fold_bn(w, b, gamma, beta, mean, var):
    """Fold inference BatchNorm1d into the conv weight/bias (exact, in f32)."""
    s = gamma * jax.lax.rsqrt(var + BN_EPS)
    return w * s[None, :], ((b - mean) * s + beta)[None, :]


@jax.jit
def meshnet_forward(adj, x, params, head):
    N, cin = x.shape

    # --- tiny host-side prep (folding / padding / bf16 casts) ---
    x_p = jnp.zeros((N, CIN_PAD), jnp.float32).at[:, :cin].set(x)
    args = [adj.astype(jnp.bfloat16), x_p.astype(jnp.bfloat16)]
    for li, p in enumerate(params):
        w, b = _fold_bn(p["w"], p["b"], p["gamma"], p["beta"], p["mean"], p["var"])
        if li == 0:  # pad input-channel dim 6 -> 16 to match the padded x
            w = jnp.zeros((CIN_PAD, w.shape[1]), jnp.float32).at[:cin, :].set(w)
        args.append(w.astype(jnp.bfloat16))
        args.append(b)                                   # bias stays f32
    wh = jnp.zeros((CHANNELS[-1], HEAD_PAD), jnp.float32).at[:, :OUT_DIM].set(head["w"])
    bh = jnp.zeros((1, HEAD_PAD), jnp.float32).at[:, :OUT_DIM].set(head["b"])
    args.append(wh.astype(jnp.bfloat16))
    args.append(bh)

    out_pad = pl.pallas_call(
        _meshnet_kernel,
        out_shape=jax.ShapeDtypeStruct((N, HEAD_PAD), jnp.float32),
        in_specs=[pl.BlockSpec(memory_space=pltpu.MemorySpace.VMEM)] * len(args),
        out_specs=pl.BlockSpec(memory_space=pltpu.MemorySpace.VMEM),
    )(*args)
    return out_pad[:, :OUT_DIM]


# ---------------------------------------------------------------------------
# Pure-JAX f32 reference (unfolded BN) for validating the bf16 kernel.
# ---------------------------------------------------------------------------
def meshnet_reference(adj, x, params, head):
    out = x
    for p in params:
        z = adj @ out @ p["w"] + p["b"]
        zn = (z - p["mean"]) * jax.lax.rsqrt(p["var"] + BN_EPS) * p["gamma"] + p["beta"]
        out = jnp.where(zn >= 0, zn, NEG_SLOPE * zn)
    return out @ head["w"] + head["b"]


# ---------------------------------------------------------------------------
# Parameter / mesh construction (deterministic, in-script)
# ---------------------------------------------------------------------------
def init_params(key):
    params = []
    for cin, cout in zip(CHANNELS[:-1], CHANNELS[1:]):
        key, kw, kb, km = jax.random.split(key, 4)
        scale = 1.0 / jnp.sqrt(jnp.float32(cin))
        layer = dict(
            w=jax.random.uniform(kw, (cin, cout), jnp.float32, -scale, scale),
            b=jax.random.uniform(kb, (cout,), jnp.float32, -scale, scale),
            gamma=jnp.ones((cout,), jnp.float32),
            beta=jnp.zeros((cout,), jnp.float32),
            mean=0.1 * jax.random.normal(km, (cout,), jnp.float32),
            var=jnp.ones((cout,), jnp.float32) + 0.05 * jnp.abs(
                jax.random.normal(jax.random.fold_in(km, 1), (cout,), jnp.float32)),
        )
        params.append(layer)
    key, kw, kb = jax.random.split(key, 3)
    scale = 1.0 / jnp.sqrt(jnp.float32(CHANNELS[-1]))
    head = dict(
        w=jax.random.uniform(kw, (CHANNELS[-1], OUT_DIM), jnp.float32, -scale, scale),
        b=jax.random.uniform(kb, (OUT_DIM,), jnp.float32, -scale, scale),
    )
    return params, head


def make_mesh_adjacency(key, n):
    """Random symmetric mesh connectivity, self-loops, row-normalized."""
    raw = jax.random.uniform(key, (n, n), jnp.float32)
    adj = (raw + raw.T) > 1.9                      # sparse-ish symmetric edges
    adj = adj.astype(jnp.float32) + jnp.eye(n, dtype=jnp.float32)
    deg = jnp.sum(adj, axis=1, keepdims=True)
    return adj / deg


if __name__ == "__main__":
    N = 128                       # number of mesh elements (faces)
    key = jax.random.PRNGKey(0)
    k_adj, k_x, k_p = jax.random.split(key, 3)

    adj = make_mesh_adjacency(k_adj, N)
    x = jax.random.normal(k_x, (N, CHANNELS[0]), jnp.float32)   # (N, 6) features
    params, head = init_params(k_p)

    out = meshnet_forward(adj, x, params, head)
    jax.block_until_ready(out)
    assert out.shape == (N, OUT_DIM)
    assert jnp.all(jnp.isfinite(out))

    # Validate bf16-operand fused kernel against the f32 reference.
    ref = meshnet_reference(adj, x, params, head)
    rel_err = jnp.max(jnp.abs(out - ref)) / (jnp.max(jnp.abs(ref)) + 1e-6)
    assert rel_err < 0.1, f"bf16 kernel deviates from f32 reference: {rel_err}"

    print("KERNEL_OK")
</pallas_src>

<mosaic_0001>
module attributes {stable_mosaic.version = 11 : i64} {
  func.func @_meshnet_kernel(%arg0: memref<128x128xbf16, #tpu.memory_space<vmem>>, %arg1: memref<128x16xbf16, #tpu.memory_space<vmem>>, %arg2: memref<16x32xbf16, #tpu.memory_space<vmem>>, %arg3: memref<1x32xf32, #tpu.memory_space<vmem>>, %arg4: memref<32x128xbf16, #tpu.memory_space<vmem>>, %arg5: memref<1x128xf32, #tpu.memory_space<vmem>>, %arg6: memref<128x128xbf16, #tpu.memory_space<vmem>>, %arg7: memref<1x128xf32, #tpu.memory_space<vmem>>, %arg8: memref<128x32xbf16, #tpu.memory_space<vmem>>, %arg9: memref<1x32xf32, #tpu.memory_space<vmem>>, %arg10: memref<32x16xbf16, #tpu.memory_space<vmem>>, %arg11: memref<1x16xf32, #tpu.memory_space<vmem>>, %arg12: memref<16x128xbf16, #tpu.memory_space<vmem>>, %arg13: memref<1x128xf32, #tpu.memory_space<vmem>>, %arg14: memref<128x128xf32, #tpu.memory_space<vmem>>) attributes {dimension_semantics = [], scalar_prefetch = 0 : i64, scratch_operands = 0 : i64, tpu.core_type = #tpu.core_type<tc>} {
    %c0 = arith.constant 0 : index
    %c0_0 = arith.constant 0 : index
    %0 = vector.load %arg0[%c0, %c0_0] : memref<128x128xbf16, #tpu.memory_space<vmem>>, vector<128x128xbf16>
    %c0_1 = arith.constant 0 : index
    %c0_2 = arith.constant 0 : index
    %1 = vector.load %arg1[%c0_1, %c0_2] : memref<128x16xbf16, #tpu.memory_space<vmem>>, vector<128x16xbf16>
    %c0_3 = arith.constant 0 : index
    %c0_4 = arith.constant 0 : index
    %2 = vector.load %arg2[%c0_3, %c0_4] : memref<16x32xbf16, #tpu.memory_space<vmem>>, vector<16x32xbf16>
    %cst = arith.constant dense<0.000000e+00> : vector<128x32xf32>
    %3 = tpu.matmul %1, %2, %cst {dimension_numbers = #tpu.dot_dimension_numbers<[1], [0], [0], [1], [0, 0, 1, 1], [], []>} : vector<128x16xbf16>, vector<16x32xbf16>, vector<128x32xf32> -> vector<128x32xf32>
    %4 = arith.truncf %3 : vector<128x32xf32> to vector<128x32xbf16>
    %cst_5 = arith.constant dense<0.000000e+00> : vector<128x32xf32>
    %5 = tpu.matmul %0, %4, %cst_5 {dimension_numbers = #tpu.dot_dimension_numbers<[1], [0], [0], [1], [0, 0, 1, 1], [], []>} : vector<128x128xbf16>, vector<128x32xbf16>, vector<128x32xf32> -> vector<128x32xf32>
    %c0_6 = arith.constant 0 : index
    %c0_7 = arith.constant 0 : index
    %6 = vector.load %arg3[%c0_6, %c0_7] : memref<1x32xf32, #tpu.memory_space<vmem>>, vector<1x32xf32>
    %7 = vector.broadcast %6 : vector<1x32xf32> to vector<128x32xf32>
    %8 = arith.addf %5, %7 : vector<128x32xf32>
    %cst_8 = arith.constant 0.000000e+00 : f32
    %9 = vector.broadcast %cst_8 : f32 to vector<128x32xf32>
    %10 = arith.cmpf oge, %8, %9 : vector<128x32xf32>
    %cst_9 = arith.constant 0.00999999977 : f32
    %11 = vector.broadcast %cst_9 : f32 to vector<128x32xf32>
    %12 = arith.mulf %11, %8 : vector<128x32xf32>
    %13 = arith.select %10, %8, %12 : vector<128x32xi1>, vector<128x32xf32>
    %14 = arith.truncf %13 : vector<128x32xf32> to vector<128x32xbf16>
    %c0_10 = arith.constant 0 : index
    %c0_11 = arith.constant 0 : index
    %15 = vector.load %arg4[%c0_10, %c0_11] : memref<32x128xbf16, #tpu.memory_space<vmem>>, vector<32x128xbf16>
    %cst_12 = arith.constant dense<0.000000e+00> : vector<128x128xf32>
    %16 = tpu.matmul %14, %15, %cst_12 {dimension_numbers = #tpu.dot_dimension_numbers<[1], [0], [0], [1], [0, 0, 1, 1], [], []>} : vector<128x32xbf16>, vector<32x128xbf16>, vector<128x128xf32> -> vector<128x128xf32>
    %17 = arith.truncf %16 : vector<128x128xf32> to vector<128x128xbf16>
    %cst_13 = arith.constant dense<0.000000e+00> : vector<128x128xf32>
    %18 = tpu.matmul %0, %17, %cst_13 {dimension_numbers = #tpu.dot_dimension_numbers<[1], [0], [0], [1], [0, 0, 1, 1], [], []>} : vector<128x128xbf16>, vector<128x128xbf16>, vector<128x128xf32> -> vector<128x128xf32>
    %c0_14 = arith.constant 0 : index
    %c0_15 = arith.constant 0 : index
    %19 = vector.load %arg5[%c0_14, %c0_15] : memref<1x128xf32, #tpu.memory_space<vmem>>, vector<1x128xf32>
    %20 = vector.broadcast %19 : vector<1x128xf32> to vector<128x128xf32>
    %21 = arith.addf %18, %20 : vector<128x128xf32>
    %cst_16 = arith.constant 0.000000e+00 : f32
    %22 = vector.broadcast %cst_16 : f32 to vector<128x128xf32>
    %23 = arith.cmpf oge, %21, %22 : vector<128x128xf32>
    %cst_17 = arith.constant 0.00999999977 : f32
    %24 = vector.broadcast %cst_17 : f32 to vector<128x128xf32>
    %25 = arith.mulf %24, %21 : vector<128x128xf32>
    %26 = arith.select %23, %21, %25 : vector<128x128xi1>, vector<128x128xf32>
    %27 = arith.truncf %26 : vector<128x128xf32> to vector<128x128xbf16>
    %c0_18 = arith.constant 0 : index
    %c0_19 = arith.constant 0 : index
    %28 = vector.load %arg6[%c0_18, %c0_19] : memref<128x128xbf16, #tpu.memory_space<vmem>>, vector<128x128xbf16>
    %cst_20 = arith.constant dense<0.000000e+00> : vector<128x128xf32>
    %29 = tpu.matmul %27, %28, %cst_20 {dimension_numbers = #tpu.dot_dimension_numbers<[1], [0], [0], [1], [0, 0, 1, 1], [], []>} : vector<128x128xbf16>, vector<128x128xbf16>, vector<128x128xf32> -> vector<128x128xf32>
    %30 = arith.truncf %29 : vector<128x128xf32> to vector<128x128xbf16>
    %cst_21 = arith.constant dense<0.000000e+00> : vector<128x128xf32>
    %31 = tpu.matmul %0, %30, %cst_21 {dimension_numbers = #tpu.dot_dimension_numbers<[1], [0], [0], [1], [0, 0, 1, 1], [], []>} : vector<128x128xbf16>, vector<128x128xbf16>, vector<128x128xf32> -> vector<128x128xf32>
    %c0_22 = arith.constant 0 : index
    %c0_23 = arith.constant 0 : index
    %32 = vector.load %arg7[%c0_22, %c0_23] : memref<1x128xf32, #tpu.memory_space<vmem>>, vector<1x128xf32>
    %33 = vector.broadcast %32 : vector<1x128xf32> to vector<128x128xf32>
    %34 = arith.addf %31, %33 : vector<128x128xf32>
    %cst_24 = arith.constant 0.000000e+00 : f32
    %35 = vector.broadcast %cst_24 : f32 to vector<128x128xf32>
    %36 = arith.cmpf oge, %34, %35 : vector<128x128xf32>
    %cst_25 = arith.constant 0.00999999977 : f32
    %37 = vector.broadcast %cst_25 : f32 to vector<128x128xf32>
    %38 = arith.mulf %37, %34 : vector<128x128xf32>
    %39 = arith.select %36, %34, %38 : vector<128x128xi1>, vector<128x128xf32>
    %40 = arith.truncf %39 : vector<128x128xf32> to vector<128x128xbf16>
    %cst_26 = arith.constant dense<0.000000e+00> : vector<128x128xf32>
    %41 = tpu.matmul %0, %40, %cst_26 {dimension_numbers = #tpu.dot_dimension_numbers<[1], [0], [0], [1], [0, 0, 1, 1], [], []>} : vector<128x128xbf16>, vector<128x128xbf16>, vector<128x128xf32> -> vector<128x128xf32>
    %42 = arith.truncf %41 : vector<128x128xf32> to vector<128x128xbf16>
    %c0_27 = arith.constant 0 : index
    %c0_28 = arith.constant 0 : index
    %43 = vector.load %arg8[%c0_27, %c0_28] : memref<128x32xbf16, #tpu.memory_space<vmem>>, vector<128x32xbf16>
    %cst_29 = arith.constant dense<0.000000e+00> : vector<128x32xf32>
    %44 = tpu.matmul %42, %43, %cst_29 {dimension_numbers = #tpu.dot_dimension_numbers<[1], [0], [0], [1], [0, 0, 1, 1], [], []>} : vector<128x128xbf16>, vector<128x32xbf16>, vector<128x32xf32> -> vector<128x32xf32>
    %c0_30 = arith.constant 0 : index
    %c0_31 = arith.constant 0 : index
    %45 = vector.load %arg9[%c0_30, %c0_31] : memref<1x32xf32, #tpu.memory_space<vmem>>, vector<1x32xf32>
    %46 = vector.broadcast %45 : vector<1x32xf32> to vector<128x32xf32>
    %47 = arith.addf %44, %46 : vector<128x32xf32>
    %cst_32 = arith.constant 0.000000e+00 : f32
    %48 = vector.broadcast %cst_32 : f32 to vector<128x32xf32>
    %49 = arith.cmpf oge, %47, %48 : vector<128x32xf32>
    %cst_33 = arith.constant 0.00999999977 : f32
    %50 = vector.broadcast %cst_33 : f32 to vector<128x32xf32>
    %51 = arith.mulf %50, %47 : vector<128x32xf32>
    %52 = arith.select %49, %47, %51 : vector<128x32xi1>, vector<128x32xf32>
    %53 = arith.truncf %52 : vector<128x32xf32> to vector<128x32xbf16>
    %cst_34 = arith.constant dense<0.000000e+00> : vector<128x32xf32>
    %54 = tpu.matmul %0, %53, %cst_34 {dimension_numbers = #tpu.dot_dimension_numbers<[1], [0], [0], [1], [0, 0, 1, 1], [], []>} : vector<128x128xbf16>, vector<128x32xbf16>, vector<128x32xf32> -> vector<128x32xf32>
    %55 = arith.truncf %54 : vector<128x32xf32> to vector<128x32xbf16>
    %c0_35 = arith.constant 0 : index
    %c0_36 = arith.constant 0 : index
    %56 = vector.load %arg10[%c0_35, %c0_36] : memref<32x16xbf16, #tpu.memory_space<vmem>>, vector<32x16xbf16>
    %cst_37 = arith.constant dense<0.000000e+00> : vector<128x16xf32>
    %57 = tpu.matmul %55, %56, %cst_37 {dimension_numbers = #tpu.dot_dimension_numbers<[1], [0], [0], [1], [0, 0, 1, 1], [], []>} : vector<128x32xbf16>, vector<32x16xbf16>, vector<128x16xf32> -> vector<128x16xf32>
    %c0_38 = arith.constant 0 : index
    %c0_39 = arith.constant 0 : index
    %58 = vector.load %arg11[%c0_38, %c0_39] : memref<1x16xf32, #tpu.memory_space<vmem>>, vector<1x16xf32>
    %59 = vector.broadcast %58 : vector<1x16xf32> to vector<128x16xf32>
    %60 = arith.addf %57, %59 : vector<128x16xf32>
    %cst_40 = arith.constant 0.000000e+00 : f32
    %61 = vector.broadcast %cst_40 : f32 to vector<128x16xf32>
    %62 = arith.cmpf oge, %60, %61 : vector<128x16xf32>
    %cst_41 = arith.constant 0.00999999977 : f32
    %63 = vector.broadcast %cst_41 : f32 to vector<128x16xf32>
    %64 = arith.mulf %63, %60 : vector<128x16xf32>
    %65 = arith.select %62, %60, %64 : vector<128x16xi1>, vector<128x16xf32>
    %66 = arith.truncf %65 : vector<128x16xf32> to vector<128x16xbf16>
    %c0_42 = arith.constant 0 : index
    %c0_43 = arith.constant 0 : index
    %67 = vector.load %arg12[%c0_42, %c0_43] : memref<16x128xbf16, #tpu.memory_space<vmem>>, vector<16x128xbf16>
    %cst_44 = arith.constant dense<0.000000e+00> : vector<128x128xf32>
    %68 = tpu.matmul %66, %67, %cst_44 {dimension_numbers = #tpu.dot_dimension_numbers<[1], [0], [0], [1], [0, 0, 1, 1], [], []>} : vector<128x16xbf16>, vector<16x128xbf16>, vector<128x128xf32> -> vector<128x128xf32>
    %c0_45 = arith.constant 0 : index
    %c0_46 = arith.constant 0 : index
    %69 = vector.load %arg13[%c0_45, %c0_46] : memref<1x128xf32, #tpu.memory_space<vmem>>, vector<1x128xf32>
    %70 = vector.broadcast %69 : vector<1x128xf32> to vector<128x128xf32>
    %71 = arith.addf %68, %70 : vector<128x128xf32>
    %c0_47 = arith.constant 0 : index
    %c0_48 = arith.constant 0 : index
    %72 = vector.load %arg14[%c0_47, %c0_48] : memref<128x128xf32, #tpu.memory_space<vmem>>, vector<128x128xf32>
    tpu.vector_store %arg14[%c0_47, %c0_48], %71 {strides = array<i32>} : memref<128x128xf32, #tpu.memory_space<vmem>>, vector<128x128xf32>,
    return
  }
}

</mosaic_0001>

<llo_original>
// kernel: meshnet_forward.1
$region0: #{meshnet_forward.1}
  #allocation0 [shape = 'u32[]', space=smem, size = 0x4, offset = 0x4, fixed_abs, tag = 'smem constant byte address 0x4 - core index']
  #allocation1 [shape = 'u32[144,128]{1,0:T(1,128)}', space=vmem, size = 0x12000, scoped, tag = 'internal scratch']
  %s0 = inlined_call_operand.vmem [shape: bf16[128,128], index: 0, kind: input, shape index: {}]
  %s1 = inlined_call_operand.vmem [shape: bf16[128,16], index: 1, kind: input, shape index: {}]
  %s2 = inlined_call_operand.vmem [shape: bf16[16,32], index: 2, kind: input, shape index: {}]
  %s3 = inlined_call_operand.vmem [shape: f32[1,32], index: 3, kind: input, shape index: {}]
  %s4 = inlined_call_operand.vmem [shape: bf16[32,128], index: 4, kind: input, shape index: {}]
  %s5 = inlined_call_operand.vmem [shape: f32[1,128], index: 5, kind: input, shape index: {}]
  %s6 = inlined_call_operand.vmem [shape: bf16[128,128], index: 6, kind: input, shape index: {}]
  %s7 = inlined_call_operand.vmem [shape: f32[1,128], index: 7, kind: input, shape index: {}]
  %s8 = inlined_call_operand.vmem [shape: bf16[128,32], index: 8, kind: input, shape index: {}]
  %s9 = inlined_call_operand.vmem [shape: f32[1,32], index: 9, kind: input, shape index: {}]
  %s10 = inlined_call_operand.vmem [shape: bf16[32,16], index: 10, kind: input, shape index: {}]
  %s11 = inlined_call_operand.vmem [shape: f32[1,16], index: 11, kind: input, shape index: {}]
  %s12 = inlined_call_operand.vmem [shape: bf16[16,128], index: 12, kind: input, shape index: {}]
  %s13 = inlined_call_operand.vmem [shape: f32[1,128], index: 13, kind: input, shape index: {}]
  %s14 = inlined_call_operand.vmem [shape: f32[128,128], index: 14, kind: output, shape index: {}]
  %s15 = sld [smem:[#allocation0]]
  $region66: #{meshnet_forward.1} parent=0
    _
  %s17 = ssub.s32 1, %s15
  %s18 = scalar_select 0, %s17, %s15
  // Predicated region
  $region2: #{meshnet_forward.1} parent=0 // pred_check
    _
  $region3: #{meshnet_forward.1} parent=0 // pred_check_branch
    %20 = sbr.rel (0) target = $region5
  $region4: #{meshnet_forward.1} parent=0 // pred_region
    _
  $region5: #{meshnet_forward.1} parent=0 // pred_fallthru
    _
  // Predicated region
  $region6: #{meshnet_forward.1} parent=0 // pred_check
    _
  $region7: #{meshnet_forward.1} parent=0 // pred_check_branch
    %22 = sbr.rel (0) target = $region9
  $region8: #{meshnet_forward.1} parent=0 // pred_region
    _
  $region9: #{meshnet_forward.1} parent=0 // pred_fallthru
    _
  // Predicated region
  $region10: #{meshnet_forward.1} parent=0 // pred_check
    _
  $region11: #{meshnet_forward.1} parent=0 // pred_check_branch
    %24 = sbr.rel (0) target = $region13
  $region12: #{meshnet_forward.1} parent=0 // pred_region
    _
  $region13: #{meshnet_forward.1} parent=0 // pred_fallthru
    _
  // Predicated region
  $region14: #{meshnet_forward.1} parent=0 // pred_check
    _
  $region15: #{meshnet_forward.1} parent=0 // pred_check_branch
    %26 = sbr.rel (0) target = $region17
  $region16: #{meshnet_forward.1} parent=0 // pred_region
    _
  $region17: #{meshnet_forward.1} parent=0 // pred_fallthru
    _
  // Predicated region
  $region18: #{meshnet_forward.1} parent=0 // pred_check
    _
  $region19: #{meshnet_forward.1} parent=0 // pred_check_branch
    %28 = sbr.rel (0) target = $region21
  $region20: #{meshnet_forward.1} parent=0 // pred_region
    _
  $region21: #{meshnet_forward.1} parent=0 // pred_fallthru
    _
  // Predicated region
  $region22: #{meshnet_forward.1} parent=0 // pred_check
    _
  $region23: #{meshnet_forward.1} parent=0 // pred_check_branch
    %30 = sbr.rel (0) target = $region25
  $region24: #{meshnet_forward.1} parent=0 // pred_region
    _
  $region25: #{meshnet_forward.1} parent=0 // pred_fallthru
    _
  // Predicated region
  $region26: #{meshnet_forward.1} parent=0 // pred_check
    _
  $region27: #{meshnet_forward.1} parent=0 // pred_check_branch
    %32 = sbr.rel (0) target = $region29
  $region28: #{meshnet_forward.1} parent=0 // pred_region
    _
  $region29: #{meshnet_forward.1} parent=0 // pred_fallthru
    _
  // Predicated region
  $region30: #{meshnet_forward.1} parent=0 // pred_check
    _
  $region31: #{meshnet_forward.1} parent=0 // pred_check_branch
    %34 = sbr.rel (0) target = $region33
  $region32: #{meshnet_forward.1} parent=0 // pred_region
    _
  $region33: #{meshnet_forward.1} parent=0 // pred_fallthru
    _
  // Predicated region
  $region34: #{meshnet_forward.1} parent=0 // pred_check
    _
  $region35: #{meshnet_forward.1} parent=0 // pred_check_branch
    %36 = sbr.rel (0) target = $region37
  $region36: #{meshnet_forward.1} parent=0 // pred_region
    _
  $region37: #{meshnet_forward.1} parent=0 // pred_fallthru
    _
  // Predicated region
  $region38: #{meshnet_forward.1} parent=0 // pred_check
    _
  $region39: #{meshnet_forward.1} parent=0 // pred_check_branch
    %38 = sbr.rel (0) target = $region41
  $region40: #{meshnet_forward.1} parent=0 // pred_region
    _
  $region41: #{meshnet_forward.1} parent=0 // pred_fallthru
    _
  // Predicated region
  $region42: #{meshnet_forward.1} parent=0 // pred_check
    _
  $region43: #{meshnet_forward.1} parent=0 // pred_check_branch
    %40 = sbr.rel (0) target = $region45
  $region44: #{meshnet_forward.1} parent=0 // pred_region
    _
  $region45: #{meshnet_forward.1} parent=0 // pred_fallthru
    _
  // Predicated region
  $region46: #{meshnet_forward.1} parent=0 // pred_check
    _
  $region47: #{meshnet_forward.1} parent=0 // pred_check_branch
    %42 = sbr.rel (0) target = $region49
  $region48: #{meshnet_forward.1} parent=0 // pred_region
    _
  $region49: #{meshnet_forward.1} parent=0 // pred_fallthru
    _
  // Predicated region
  $region50: #{meshnet_forward.1} parent=0 // pred_check
    _
  $region51: #{meshnet_forward.1} parent=0 // pred_check_branch
    %44 = sbr.rel (0) target = $region53
  $region52: #{meshnet_forward.1} parent=0 // pred_region
    _
  $region53: #{meshnet_forward.1} parent=0 // pred_fallthru
    _
  // Predicated region
  $region54: #{meshnet_forward.1} parent=0 // pred_check
    _
  $region55: #{meshnet_forward.1} parent=0 // pred_check_branch
    %46 = sbr.rel (0) target = $region57
  $region56: #{meshnet_forward.1} parent=0 // pred_region
    _
  $region57: #{meshnet_forward.1} parent=0 // pred_fallthru
    _
  %v48 = vld [vmem:[%s0] sm:$0xf]
  %v49 = vld [vmem:[%s0 + $0x4] sm:$0xf]
  %v50 = vld [vmem:[%s0 + $0x8] sm:$0xf]
  %v51 = vld [vmem:[%s0 + $0xc] sm:$0xf]
  %v52 = vld [vmem:[%s0 + $0x10] sm:$0xf]
  %v53 = vld [vmem:[%s0 + $0x14] sm:$0xf]
  %v54 = vld [vmem:[%s0 + $0x18] sm:$0xf]
  %v55 = vld [vmem:[%s0 + $0x1c] sm:$0xf]
  %v56 = vld [vmem:[%s0 + $0x20] sm:$0xf]
  %v57 = vld [vmem:[%s0 + $0x24] sm:$0xf]
  %v58 = vld [vmem:[%s0 + $0x28] sm:$0xf]
  %v59 = vld [vmem:[%s0 + $0x2c] sm:$0xf]
  %v60 = vld [vmem:[%s0 + $0x30] sm:$0xf]
  %v61 = vld [vmem:[%s0 + $0x34] sm:$0xf]
  %v62 = vld [vmem:[%s0 + $0x38] sm:$0xf]
  %v63 = vld [vmem:[%s0 + $0x3c] sm:$0xf]
  %v64 = vld [vmem:[%s1] sm:$0xf]
  %v65 = vld [vmem:[%s1 + $0x4] sm:$0xf]
  %v66 = vld [vmem:[%s1 + $0x8] sm:$0xf]
  %v67 = vld [vmem:[%s1 + $0xc] sm:$0xf]
  %v68 = vld [vmem:[%s1 + $0x10] sm:$0xf]
  %v69 = vld [vmem:[%s1 + $0x14] sm:$0xf]
  %v70 = vld [vmem:[%s1 + $0x18] sm:$0xf]
  %v71 = vld [vmem:[%s1 + $0x1c] sm:$0xf]
  %v72 = vld [vmem:[%s1 + $0x20] sm:$0xf]
  %v73 = vld [vmem:[%s1 + $0x24] sm:$0xf]
  %v74 = vld [vmem:[%s1 + $0x28] sm:$0xf]
  %v75 = vld [vmem:[%s1 + $0x2c] sm:$0xf]
  %v76 = vld [vmem:[%s1 + $0x30] sm:$0xf]
  %v77 = vld [vmem:[%s1 + $0x34] sm:$0xf]
  %v78 = vld [vmem:[%s1 + $0x38] sm:$0xf]
  %v79 = vld [vmem:[%s1 + $0x3c] sm:$0xf]
  %v80 = vld [vmem:[%s2] sm:$0xf]
  %v81 = vld [vmem:[%s2 + $0x4] sm:$0xf]
  %v98 = vunpack.c.l.b16 %v64
  %v99 = vunpack.c.l.b16 %v65
  %v100 = vunpack.c.l.b16 %v66
  %v101 = vunpack.c.l.b16 %v67
  %v102 = vunpack.c.l.b16 %v68
  %v103 = vunpack.c.l.b16 %v69
  %v104 = vunpack.c.l.b16 %v70
  %v105 = vunpack.c.l.b16 %v71
  %v106 = vunpack.c.l.b16 %v72
  %v107 = vunpack.c.l.b16 %v73
  %v108 = vunpack.c.l.b16 %v74
  %v109 = vunpack.c.l.b16 %v75
  %v110 = vunpack.c.l.b16 %v76
  %v111 = vunpack.c.l.b16 %v77
  %v112 = vunpack.c.l.b16 %v78
  %v113 = vunpack.c.l.b16 %v79
  %v114 = vpack.c.b16 %v99, %v98
  %v115 = vpack.c.b16 %v101, %v100
  %v116 = vpack.c.b16 %v103, %v102
  %v117 = vpack.c.b16 %v105, %v104
  %v118 = vpack.c.b16 %v107, %v106
  %v119 = vpack.c.b16 %v109, %v108
  %v120 = vpack.c.b16 %v111, %v110
  %v121 = vpack.c.b16 %v113, %v112
  %v124 = vunpack.c.l.b16 %v80
  %v125 = vunpack.c.l.b16 %v81
  %v126 = vpack.c.b16 %v125, %v124
  %vm128 = vcmask 130048
  %v130 = vsel %vm128, %v114, 0
  %v133 = vsel %vm128, %v115, 0
  %v136 = vsel %vm128, %v116, 0
  %v139 = vsel %vm128, %v117, 0
  %v142 = vsel %vm128, %v118, 0
  %v145 = vsel %vm128, %v119, 0
  %v148 = vsel %vm128, %v120, 0
  %v151 = vsel %vm128, %v121, 0
  %153 = vmatprep.subr.bf16.mxu0 0
  %154 = vmatpush1.bf16.msra.mxu0 %v126
  %155 = vmatprep.subr.bf16.mxu0 0
  %156 = vmatpush1.bf16.msra.mxu0 0
  %157 = vmatprep.subr.bf16.mxu0 0
  %158 = vmatpush1.bf16.msra.mxu0 0
  %159 = vmatprep.subr.bf16.mxu0 0
  %160 = vmatpush1.bf16.msra.mxu0 0
  %161 = vmatprep.subr.bf16.mxu0 0
  %162 = vmatpush1.bf16.msra.mxu0 0
  %163 = vmatprep.subr.bf16.mxu0 0
  %164 = vmatpush1.bf16.msra.mxu0 0
  %165 = vmatprep.subr.bf16.mxu0 0
  %166 = vmatpush1.bf16.msra.mxu0 0
  %167 = vmatprep.subr.bf16.mxu0 0
  %168 = vmatpush1.bf16.msra.mxu0 0
  %169 = vmatprep.subr.bf16.mxu0 0
  %170 = vmatpush1.bf16.msra.mxu0 0
  %171 = vmatprep.subr.bf16.mxu0 0
  %172 = vmatpush1.bf16.msra.mxu0 0
  %173 = vmatprep.subr.bf16.mxu0 0
  %174 = vmatpush1.bf16.msra.mxu0 0
  %175 = vmatprep.subr.bf16.mxu0 0
  %176 = vmatpush1.bf16.msra.mxu0 0
  %177 = vmatprep.subr.bf16.mxu0 0
  %178 = vmatpush1.bf16.msra.mxu0 0
  %179 = vmatprep.subr.bf16.mxu0 0
  %180 = vmatpush1.bf16.msra.mxu0 0
  %181 = vmatprep.subr.bf16.mxu0 0
  %182 = vmatpush1.bf16.msra.mxu0 0
  %183 = vmatprep.subr.bf16.mxu0 0
  %184 = vmatpush1.bf16.msra.mxu0 0
  %185 = vmatprep.mubr.bf16.mxu0 0
  %186 = vmatmul.mubr.bf16.gmra.mrb[0].mxu0 %v130
  %v187 = vpop.f32.mrb[0].mxu0
  %v188 = vadd.f32 0.0, %v187
  %v189 = vpop.f32.mrb[0].mxu0
  %v190 = vpop.f32.mrb[0].mxu0
  %v191 = vadd.f32 0.0, %v190
  %v192 = vpop.f32.mrb[0].mxu0
  %193 = vmatprep.mubr.bf16.mxu0 0
  %194 = vmatmul.mubr.bf16.gmra.mrb[0].mxu0 %v133
  %v195 = vpop.f32.mrb[0].mxu0
  %v196 = vadd.f32 0.0, %v195
  %v197 = vpop.f32.mrb[0].mxu0
  %v198 = vpop.f32.mrb[0].mxu0
  %v199 = vadd.f32 0.0, %v198
  %v200 = vpop.f32.mrb[0].mxu0
  %201 = vmatprep.mubr.bf16.mxu0 0
  %202 = vmatmul.mubr.bf16.gmra.mrb[0].mxu0 %v136
  %v203 = vpop.f32.mrb[0].mxu0
  %v204 = vadd.f32 0.0, %v203
  %v205 = vpop.f32.mrb[0].mxu0
  %v206 = vpop.f32.mrb[0].mxu0
  %v207 = vadd.f32 0.0, %v206
  %v208 = vpop.f32.mrb[0].mxu0
  %209 = vmatprep.mubr.bf16.mxu0 0
  %210 = vmatmul.mubr.bf16.gmra.mrb[0].mxu0 %v139
  %v211 = vpop.f32.mrb[0].mxu0
  %v212 = vadd.f32 0.0, %v211
  %v213 = vpop.f32.mrb[0].mxu0
  %v214 = vpop.f32.mrb[0].mxu0
  %v215 = vadd.f32 0.0, %v214
  %v216 = vpop.f32.mrb[0].mxu0
  %217 = vmatprep.mubr.bf16.mxu0 0
  %218 = vmatmul.mubr.bf16.gmra.mrb[0].mxu0 %v142
  %v219 = vpop.f32.mrb[0].mxu0
  %v220 = vadd.f32 0.0, %v219
  %v221 = vpop.f32.mrb[0].mxu0
  %v222 = vpop.f32.mrb[0].mxu0
  %v223 = vadd.f32 0.0, %v222
  %v224 = vpop.f32.mrb[0].mxu0
  %225 = vmatprep.mubr.bf16.mxu0 0
  %226 = vmatmul.mubr.bf16.gmra.mrb[0].mxu0 %v145
  %v227 = vpop.f32.mrb[0].mxu0
  %v228 = vadd.f32 0.0, %v227
  %v229 = vpop.f32.mrb[0].mxu0
  %v230 = vpop.f32.mrb[0].mxu0
  %v231 = vadd.f32 0.0, %v230
  %v232 = vpop.f32.mrb[0].mxu0
  %233 = vmatprep.mubr.bf16.mxu0 0
  %234 = vmatmul.mubr.bf16.gmra.mrb[0].mxu0 %v148
  %v235 = vpop.f32.mrb[0].mxu0
  %v236 = vadd.f32 0.0, %v235
  %v237 = vpop.f32.mrb[0].mxu0
  %v238 = vpop.f32.mrb[0].mxu0
  %v239 = vadd.f32 0.0, %v238
  %v240 = vpop.f32.mrb[0].mxu0
  %241 = vmatprep.mubr.bf16.mxu0 0
  %242 = vmatmul.mubr.bf16.gmra.mrb[0].mxu0 %v151
  %v243 = vpop.f32.mrb[0].mxu0
  %v244 = vadd.f32 0.0, %v243
  %v245 = vpop.f32.mrb[0].mxu0
  %v246 = vpop.f32.mrb[0].mxu0
  %v247 = vadd.f32 0.0, %v246
  %v248 = vpop.f32.mrb[0].mxu0
  %249 = vdwg.mxu0
  %v250 = vpack.c.bf16 %v191, %v188
  %v251 = vpack.c.bf16 %v199, %v196
  %v252 = vpack.c.bf16 %v207, %v204
  %v253 = vpack.c.bf16 %v215, %v212
  %v254 = vpack.c.bf16 %v223, %v220
  %v255 = vpack.c.bf16 %v231, %v228
  %v256 = vpack.c.bf16 %v239, %v236
  %v257 = vpack.c.bf16 %v247, %v244
  %v258 = vld [vmem:[%s3] sm:$0x1]
  %v260 = vlaneseq
  %v261 = vshrl.u32 %v260, 7
  %v262 = vsub.s32 0, %v261
  %v263 = vrot.slane %v258, %v262
  %v281 = vunpack.c.l.b16 %v48
  %v282 = vunpack.c.l.b16 %v49
  %v283 = vunpack.c.l.b16 %v50
  %v284 = vunpack.c.l.b16 %v51
  %v285 = vunpack.c.l.b16 %v52
  %v286 = vunpack.c.l.b16 %v53
  %v287 = vunpack.c.l.b16 %v54
  %v288 = vunpack.c.l.b16 %v55
  %v289 = vunpack.c.l.b16 %v56
  %v290 = vunpack.c.l.b16 %v57
  %v291 = vunpack.c.l.b16 %v58
  %v292 = vunpack.c.l.b16 %v59
  %v293 = vunpack.c.l.b16 %v60
  %v294 = vunpack.c.l.b16 %v61
  %v295 = vunpack.c.l.b16 %v62
  %v296 = vunpack.c.l.b16 %v63
  %v297 = vpack.c.b16 %v282, %v281
  %v298 = vpack.c.b16 %v284, %v283
  %v299 = vpack.c.b16 %v286, %v285
  %v300 = vpack.c.b16 %v288, %v287
  %v301 = vpack.c.b16 %v290, %v289
  %v302 = vpack.c.b16 %v292, %v291
  %v303 = vpack.c.b16 %v294, %v293
  %v304 = vpack.c.b16 %v296, %v295
  %313 = vmatprep.subr.bf16.mxu0 0
  %314 = vmatpush1.bf16.msra.mxu0 %v250
  %315 = vmatprep.subr.bf16.mxu0 0
  %316 = vmatpush1.bf16.msra.mxu0 %v251
  %317 = vmatprep.subr.bf16.mxu0 0
  %318 = vmatpush1.bf16.msra.mxu0 %v252
  %319 = vmatprep.subr.bf16.mxu0 0
  %320 = vmatpush1.bf16.msra.mxu0 %v253
  %321 = vmatprep.subr.bf16.mxu0 0
  %322 = vmatpush1.bf16.msra.mxu0 %v254
  %323 = vmatprep.subr.bf16.mxu0 0
  %324 = vmatpush1.bf16.msra.mxu0 %v255
  %325 = vmatprep.subr.bf16.mxu0 0
  %326 = vmatpush1.bf16.msra.mxu0 %v256
  %327 = vmatprep.subr.bf16.mxu0 0
  %328 = vmatpush1.bf16.msra.mxu0 %v257
  %329 = vmatprep.subr.bf16.mxu0 0
  %330 = vmatpush1.bf16.msra.mxu0 0
  %331 = vmatprep.subr.bf16.mxu0 0
  %332 = vmatpush1.bf16.msra.mxu0 0
  %333 = vmatprep.subr.bf16.mxu0 0
  %334 = vmatpush1.bf16.msra.mxu0 0
  %335 = vmatprep.subr.bf16.mxu0 0
  %336 = vmatpush1.bf16.msra.mxu0 0
  %337 = vmatprep.subr.bf16.mxu0 0
  %338 = vmatpush1.bf16.msra.mxu0 0
  %339 = vmatprep.subr.bf16.mxu0 0
  %340 = vmatpush1.bf16.msra.mxu0 0
  %341 = vmatprep.subr.bf16.mxu0 0
  %342 = vmatpush1.bf16.msra.mxu0 0
  %343 = vmatprep.subr.bf16.mxu0 0
  %344 = vmatpush1.bf16.msra.mxu0 0
  %345 = vmatprep.mubr.bf16.mxu0 0
  %346 = vmatmul.mubr.bf16.gmra.mrb[0].mxu0 %v297
  %v347 = vpop.f32.mrb[0].mxu0
  %v348 = vadd.f32 %v263, %v347
  %v349 = vpop.f32.mrb[0].mxu0
  %v350 = vpop.f32.mrb[0].mxu0
  %v351 = vadd.f32 %v263, %v350
  %v352 = vpop.f32.mrb[0].mxu0
  %353 = vmatprep.mubr.bf16.mxu0 0
  %354 = vmatmul.mubr.bf16.gmra.mrb[0].mxu0 %v298
  %v355 = vpop.f32.mrb[0].mxu0
  %v356 = vadd.f32 %v263, %v355
  %v357 = vpop.f32.mrb[0].mxu0
  %v358 = vpop.f32.mrb[0].mxu0
  %v359 = vadd.f32 %v263, %v358
  %v360 = vpop.f32.mrb[0].mxu0
  %361 = vmatprep.mubr.bf16.mxu0 0
  %362 = vmatmul.mubr.bf16.gmra.mrb[0].mxu0 %v299
  %v363 = vpop.f32.mrb[0].mxu0
  %v364 = vadd.f32 %v263, %v363
  %v365 = vpop.f32.mrb[0].mxu0
  %v366 = vpop.f32.mrb[0].mxu0
  %v367 = vadd.f32 %v263, %v366
  %v368 = vpop.f32.mrb[0].mxu0
  %369 = vmatprep.mubr.bf16.mxu0 0
  %370 = vmatmul.mubr.bf16.gmra.mrb[0].mxu0 %v300
  %v371 = vpop.f32.mrb[0].mxu0
  %v372 = vadd.f32 %v263, %v371
  %v373 = vpop.f32.mrb[0].mxu0
  %v374 = vpop.f32.mrb[0].mxu0
  %v375 = vadd.f32 %v263, %v374
  %v376 = vpop.f32.mrb[0].mxu0
  %377 = vmatprep.mubr.bf16.mxu0 0
  %378 = vmatmul.mubr.bf16.gmra.mrb[0].mxu0 %v301
  %v379 = vpop.f32.mrb[0].mxu0
  %v380 = vadd.f32 %v263, %v379
  %v381 = vpop.f32.mrb[0].mxu0
  %v382 = vpop.f32.mrb[0].mxu0
  %v383 = vadd.f32 %v263, %v382
  %v384 = vpop.f32.mrb[0].mxu0
  %385 = vmatprep.mubr.bf16.mxu0 0
  %386 = vmatmul.mubr.bf16.gmra.mrb[0].mxu0 %v302
  %v387 = vpop.f32.mrb[0].mxu0
  %v388 = vadd.f32 %v263, %v387
  %v389 = vpop.f32.mrb[0].mxu0
  %v390 = vpop.f32.mrb[0].mxu0
  %v391 = vadd.f32 %v263, %v390
  %v392 = vpop.f32.mrb[0].mxu0
  %393 = vmatprep.mubr.bf16.mxu0 0
  %394 = vmatmul.mubr.bf16.gmra.mrb[0].mxu0 %v303
  %v395 = vpop.f32.mrb[0].mxu0
  %v396 = vadd.f32 %v263, %v395
  %v397 = vpop.f32.mrb[0].mxu0
  %v398 = vpop.f32.mrb[0].mxu0
  %v399 = vadd.f32 %v263, %v398
  %v400 = vpop.f32.mrb[0].mxu0
  %401 = vmatprep.mubr.bf16.mxu0 0
  %402 = vmatmul.mubr.bf16.gmra.mrb[0].mxu0 %v304
  %v403 = vpop.f32.mrb[0].mxu0
  %v404 = vadd.f32 %v263, %v403
  %v405 = vpop.f32.mrb[0].mxu0
  %v406 = vpop.f32.mrb[0].mxu0
  %v407 = vadd.f32 %v263, %v406
  %v408 = vpop.f32.mrb[0].mxu0
  %409 = vdwg.mxu0
  %vm410 = vcmp.ge.f32.partialorder %v348, 0.0
  %vm411 = vcmp.ge.f32.partialorder %v351, 0.0
  %vm412 = vcmp.ge.f32.partialorder %v356, 0.0
  %vm413 = vcmp.ge.f32.partialorder %v359, 0.0
  %vm414 = vcmp.ge.f32.partialorder %v364, 0.0
  %vm415 = vcmp.ge.f32.partialorder %v367, 0.0
  %vm416 = vcmp.ge.f32.partialorder %v372, 0.0
  %vm417 = vcmp.ge.f32.partialorder %v375, 0.0
  %vm418 = vcmp.ge.f32.partialorder %v380, 0.0
  %vm419 = vcmp.ge.f32.partialorder %v383, 0.0
  %vm420 = vcmp.ge.f32.partialorder %v388, 0.0
  %vm421 = vcmp.ge.f32.partialorder %v391, 0.0
  %vm422 = vcmp.ge.f32.partialorder %v396, 0.0
  %vm423 = vcmp.ge.f32.partialorder %v399, 0.0
  %vm424 = vcmp.ge.f32.partialorder %v404, 0.0
  %vm425 = vcmp.ge.f32.partialorder %v407, 0.0
  %v426 = vmul.f32 %v348, 0.01
  %v427 = vmul.f32 %v351, 0.01
  %v428 = vmul.f32 %v356, 0.01
  %v429 = vmul.f32 %v359, 0.01
  %v430 = vmul.f32 %v364, 0.01
  %v431 = vmul.f32 %v367, 0.01
  %v432 = vmul.f32 %v372, 0.01
  %v433 = vmul.f32 %v375, 0.01
  %v434 = vmul.f32 %v380, 0.01
  %v435 = vmul.f32 %v383, 0.01
  %v436 = vmul.f32 %v388, 0.01
  %v437 = vmul.f32 %v391, 0.01
  %v438 = vmul.f32 %v396, 0.01
  %v439 = vmul.f32 %v399, 0.01
  %v440 = vmul.f32 %v404, 0.01
  %v441 = vmul.f32 %v407, 0.01
  %v442 = vsel %vm410, %v348, %v426
  %v443 = vsel %vm411, %v351, %v427
  %v444 = vsel %vm412, %v356, %v428
  %v445 = vsel %vm413, %v359, %v429
  %v446 = vsel %vm414, %v364, %v430
  %v447 = vsel %vm415, %v367, %v431
  %v448 = vsel %vm416, %v372, %v432
  %v449 = vsel %vm417, %v375, %v433
  %v450 = vsel %vm418, %v380, %v434
  %v451 = vsel %vm419, %v383, %v435
  %v452 = vsel %vm420, %v388, %v436
  %v453 = vsel %vm421, %v391, %v437
  %v454 = vsel %vm422, %v396, %v438
  %v455 = vsel %vm423, %v399, %v439
  %v456 = vsel %vm424, %v404, %v440
  %v457 = vsel %vm425, %v407, %v441
  %v458 = vpack.c.bf16 %v443, %v442
  %v459 = vpack.c.bf16 %v445, %v444
  %v460 = vpack.c.bf16 %v447, %v446
  %v461 = vpack.c.bf16 %v449, %v448
  %v462 = vpack.c.bf16 %v451, %v450
  %v463 = vpack.c.bf16 %v453, %v452
  %v464 = vpack.c.bf16 %v455, %v454
  %v465 = vpack.c.bf16 %v457, %v456
  %v466 = vld [vmem:[%s4] sm:$0xf]
  %v467 = vld [vmem:[%s4 + $0x4] sm:$0xf]
  %v468 = vld [vmem:[%s4 + $0x8] sm:$0xf]
  %v469 = vld [vmem:[%s4 + $0xc] sm:$0xf]
  %v474 = vunpack.c.l.b16 %v466
  %v475 = vunpack.c.l.b16 %v467
  %v476 = vunpack.c.l.b16 %v468
  %v477 = vunpack.c.l.b16 %v469
  %v478 = vpack.c.b16 %v475, %v474
  %v479 = vpack.c.b16 %v477, %v476
  %vm482 = vcmask 261120
  %v484 = vsel %vm482, %v458, 0
  %v487 = vsel %vm482, %v459, 0
  %v490 = vsel %vm482, %v460, 0
  %v493 = vsel %vm482, %v461, 0
  %v496 = vsel %vm482, %v462, 0
  %v499 = vsel %vm482, %v463, 0
  %v502 = vsel %vm482, %v464, 0
  %v505 = vsel %vm482, %v465, 0
  %507 = vmatprep.subr.bf16.mxu0 0
  %508 = vmatpush1.bf16.msra.mxu0 %v478
  %509 = vmatprep.subr.bf16.mxu0 0
  %510 = vmatpush1.bf16.msra.mxu0 %v479
  %511 = vmatprep.subr.bf16.mxu0 0
  %512 = vmatpush1.bf16.msra.mxu0 0
  %513 = vmatprep.subr.bf16.mxu0 0
  %514 = vmatpush1.bf16.msra.mxu0 0
  %515 = vmatprep.subr.bf16.mxu0 0
  %516 = vmatpush1.bf16.msra.mxu0 0
  %517 = vmatprep.subr.bf16.mxu0 0
  %518 = vmatpush1.bf16.msra.mxu0 0
  %519 = vmatprep.subr.bf16.mxu0 0
  %520 = vmatpush1.bf16.msra.mxu0 0
  %521 = vmatprep.subr.bf16.mxu0 0
  %522 = vmatpush1.bf16.msra.mxu0 0
  %523 = vmatprep.subr.bf16.mxu0 0
  %524 = vmatpush1.bf16.msra.mxu0 0
  %525 = vmatprep.subr.bf16.mxu0 0
  %526 = vmatpush1.bf16.msra.mxu0 0
  %527 = vmatprep.subr.bf16.mxu0 0
  %528 = vmatpush1.bf16.msra.mxu0 0
  %529 = vmatprep.subr.bf16.mxu0 0
  %530 = vmatpush1.bf16.msra.mxu0 0
  %531 = vmatprep.subr.bf16.mxu0 0
  %532 = vmatpush1.bf16.msra.mxu0 0
  %533 = vmatprep.subr.bf16.mxu0 0
  %534 = vmatpush1.bf16.msra.mxu0 0
  %535 = vmatprep.subr.bf16.mxu0 0
  %536 = vmatpush1.bf16.msra.mxu0 0
  %537 = vmatprep.subr.bf16.mxu0 0
  %538 = vmatpush1.bf16.msra.mxu0 0
  %539 = vmatprep.mubr.bf16.mxu0 0
  %540 = vmatmul.mubr.bf16.gmra.mrb[0].mxu0 %v484
  %v541 = vpop.f32.mrb[0].mxu0
  %v542 = vadd.f32 0.0, %v541
  %v543 = vpop.f32.mrb[0].mxu0
  %v544 = vpop.f32.mrb[0].mxu0
  %v545 = vadd.f32 0.0, %v544
  %v546 = vpop.f32.mrb[0].mxu0
  %547 = vmatprep.mubr.bf16.mxu0 0
  %548 = vmatmul.mubr.bf16.gmra.mrb[0].mxu0 %v487
  %v549 = vpop.f32.mrb[0].mxu0
  %v550 = vadd.f32 0.0, %v549
  %v551 = vpop.f32.mrb[0].mxu0
  %v552 = vpop.f32.mrb[0].mxu0
  %v553 = vadd.f32 0.0, %v552
  %v554 = vpop.f32.mrb[0].mxu0
  %555 = vmatprep.mubr.bf16.mxu0 0
  %556 = vmatmul.mubr.bf16.gmra.mrb[0].mxu0 %v490
  %v557 = vpop.f32.mrb[0].mxu0
  %v558 = vadd.f32 0.0, %v557
  %v559 = vpop.f32.mrb[0].mxu0
  %v560 = vpop.f32.mrb[0].mxu0
  %v561 = vadd.f32 0.0, %v560
  %v562 = vpop.f32.mrb[0].mxu0
  %563 = vmatprep.mubr.bf16.mxu0 0
  %564 = vmatmul.mubr.bf16.gmra.mrb[0].mxu0 %v493
  %v565 = vpop.f32.mrb[0].mxu0
  %v566 = vadd.f32 0.0, %v565
  %v567 = vpop.f32.mrb[0].mxu0
  %v568 = vpop.f32.mrb[0].mxu0
  %v569 = vadd.f32 0.0, %v568
  %v570 = vpop.f32.mrb[0].mxu0
  %571 = vmatprep.mubr.bf16.mxu0 0
  %572 = vmatmul.mubr.bf16.gmra.mrb[0].mxu0 %v496
  %v573 = vpop.f32.mrb[0].mxu0
  %v574 = vadd.f32 0.0, %v573
  %v575 = vpop.f32.mrb[0].mxu0
  %v576 = vpop.f32.mrb[0].mxu0
  %v577 = vadd.f32 0.0, %v576
  %v578 = vpop.f32.mrb[0].mxu0
  %579 = vmatprep.mubr.bf16.mxu0 0
  %580 = vmatmul.mubr.bf16.gmra.mrb[0].mxu0 %v499
  %v581 = vpop.f32.mrb[0].mxu0
  %v582 = vadd.f32 0.0, %v581
  %v583 = vpop.f32.mrb[0].mxu0
  %v584 = vpop.f32.mrb[0].mxu0
  %v585 = vadd.f32 0.0, %v584
  %v586 = vpop.f32.mrb[0].mxu0
  %587 = vmatprep.mubr.bf16.mxu0 0
  %588 = vmatmul.mubr.bf16.gmra.mrb[0].mxu0 %v502
  %v589 = vpop.f32.mrb[0].mxu0
  %v590 = vadd.f32 0.0, %v589
  %v591 = vpop.f32.mrb[0].mxu0
  %v592 = vpop.f32.mrb[0].mxu0
  %v593 = vadd.f32 0.0, %v592
  %v594 = vpop.f32.mrb[0].mxu0
  %595 = vmatprep.mubr.bf16.mxu0 0
  %596 = vmatmul.mubr.bf16.gmra.mrb[0].mxu0 %v505
  %v597 = vpop.f32.mrb[0].mxu0
  %v598 = vadd.f32 0.0, %v597
  %v599 = vpop.f32.mrb[0].mxu0
  %v600 = vpop.f32.mrb[0].mxu0
  %v601 = vadd.f32 0.0, %v600
  %v602 = vpop.f32.mrb[0].mxu0
  %603 = vdwg.mxu0
  %v604 = vpack.c.bf16 %v545, %v542
  %v605 = vpack.c.bf16 %v553, %v550
  %v606 = vpack.c.bf16 %v561, %v558
  %v607 = vpack.c.bf16 %v569, %v566
  %v608 = vpack.c.bf16 %v577, %v574
  %v609 = vpack.c.bf16 %v585, %v582
  %v610 = vpack.c.bf16 %v593, %v590
  %v611 = vpack.c.bf16 %v601, %v598
  %v612 = vld [vmem:[%s5] sm:$0x1]
  %v614 = vlaneseq
  %v615 = vshrl.u32 %v614, 7
  %v616 = vsub.s32 0, %v615
  %v617 = vrot.slane %v612, %v616
  %619 = vmatprep.subr.bf16.mxu0 0
  %620 = vmatpush1.bf16.msra.mxu0 %v604
  %621 = vmatprep.subr.bf16.mxu0 0
  %622 = vmatpush1.bf16.msra.mxu0 %v605
  %623 = vmatprep.subr.bf16.mxu0 0
  %624 = vmatpush1.bf16.msra.mxu0 %v606
  %625 = vmatprep.subr.bf16.mxu0 0
  %626 = vmatpush1.bf16.msra.mxu0 %v607
  %627 = vmatprep.subr.bf16.mxu0 0
  %628 = vmatpush1.bf16.msra.mxu0 %v608
  %629 = vmatprep.subr.bf16.mxu0 0
  %630 = vmatpush1.bf16.msra.mxu0 %v609
  %631 = vmatprep.subr.bf16.mxu0 0
  %632 = vmatpush1.bf16.msra.mxu0 %v610
  %633 = vmatprep.subr.bf16.mxu0 0
  %634 = vmatpush1.bf16.msra.mxu0 %v611
  %635 = vmatprep.subr.bf16.mxu0 0
  %636 = vmatpush1.bf16.msra.mxu0 0
  %637 = vmatprep.subr.bf16.mxu0 0
  %638 = vmatpush1.bf16.msra.mxu0 0
  %639 = vmatprep.subr.bf16.mxu0 0
  %640 = vmatpush1.bf16.msra.mxu0 0
  %641 = vmatprep.subr.bf16.mxu0 0
  %642 = vmatpush1.bf16.msra.mxu0 0
  %643 = vmatprep.subr.bf16.mxu0 0
  %644 = vmatpush1.bf16.msra.mxu0 0
  %645 = vmatprep.subr.bf16.mxu0 0
  %646 = vmatpush1.bf16.msra.mxu0 0
  %647 = vmatprep.subr.bf16.mxu0 0
  %648 = vmatpush1.bf16.msra.mxu0 0
  %649 = vmatprep.subr.bf16.mxu0 0
  %650 = vmatpush1.bf16.msra.mxu0 0
  %651 = vmatprep.mubr.bf16.mxu0 0
  %652 = vmatmul.mubr.bf16.gmra.mrb[0].mxu0 %v297
  %v653 = vpop.f32.mrb[0].mxu0
  %v654 = vadd.f32 %v617, %v653
  %v655 = vpop.f32.mrb[0].mxu0
  %v656 = vpop.f32.mrb[0].mxu0
  %v657 = vadd.f32 %v617, %v656
  %v658 = vpop.f32.mrb[0].mxu0
  %659 = vmatprep.mubr.bf16.mxu0 0
  %660 = vmatmul.mubr.bf16.gmra.mrb[0].mxu0 %v298
  %v661 = vpop.f32.mrb[0].mxu0
  %v662 = vadd.f32 %v617, %v661
  %v663 = vpop.f32.mrb[0].mxu0
  %v664 = vpop.f32.mrb[0].mxu0
  %v665 = vadd.f32 %v617, %v664
  %v666 = vpop.f32.mrb[0].mxu0
  %667 = vmatprep.mubr.bf16.mxu0 0
  %668 = vmatmul.mubr.bf16.gmra.mrb[0].mxu0 %v299
  %v669 = vpop.f32.mrb[0].mxu0
  %v670 = vadd.f32 %v617, %v669
  %v671 = vpop.f32.mrb[0].mxu0
  %v672 = vpop.f32.mrb[0].mxu0
  %v673 = vadd.f32 %v617, %v672
  %v674 = vpop.f32.mrb[0].mxu0
  %675 = vmatprep.mubr.bf16.mxu0 0
  %676 = vmatmul.mubr.bf16.gmra.mrb[0].mxu0 %v300
  %v677 = vpop.f32.mrb[0].mxu0
  %v678 = vadd.f32 %v617, %v677
  %v679 = vpop.f32.mrb[0].mxu0
  %v680 = vpop.f32.mrb[0].mxu0
  %v681 = vadd.f32 %v617, %v680
  %v682 = vpop.f32.mrb[0].mxu0
  %683 = vmatprep.mubr.bf16.mxu0 0
  %684 = vmatmul.mubr.bf16.gmra.mrb[0].mxu0 %v301
  %v685 = vpop.f32.mrb[0].mxu0
  %v686 = vadd.f32 %v617, %v685
  %v687 = vpop.f32.mrb[0].mxu0
  %v688 = vpop.f32.mrb[0].mxu0
  %v689 = vadd.f32 %v617, %v688
  %v690 = vpop.f32.mrb[0].mxu0
  %691 = vmatprep.mubr.bf16.mxu0 0
  %692 = vmatmul.mubr.bf16.gmra.mrb[0].mxu0 %v302
  %v693 = vpop.f32.mrb[0].mxu0
  %v694 = vadd.f32 %v617, %v693
  %v695 = vpop.f32.mrb[0].mxu0
  %v696 = vpop.f32.mrb[0].mxu0
  %v697 = vadd.f32 %v617, %v696
  %v698 = vpop.f32.mrb[0].mxu0
  %699 = vmatprep.mubr.bf16.mxu0 0
  %700 = vmatmul.mubr.bf16.gmra.mrb[0].mxu0 %v303
  %v701 = vpop.f32.mrb[0].mxu0
  %v702 = vadd.f32 %v617, %v701
  %v703 = vpop.f32.mrb[0].mxu0
  %v704 = vpop.f32.mrb[0].mxu0
  %v705 = vadd.f32 %v617, %v704
  %v706 = vpop.f32.mrb[0].mxu0
  %707 = vmatprep.mubr.bf16.mxu0 0
  %708 = vmatmul.mubr.bf16.gmra.mrb[0].mxu0 %v304
  %v709 = vpop.f32.mrb[0].mxu0
  %v710 = vadd.f32 %v617, %v709
  %v711 = vpop.f32.mrb[0].mxu0
  %v712 = vpop.f32.mrb[0].mxu0
  %v713 = vadd.f32 %v617, %v712
  %v714 = vpop.f32.mrb[0].mxu0
  %715 = vdwg.mxu0
  %vm716 = vcmp.ge.f32.partialorder %v654, 0.0
  %vm717 = vcmp.ge.f32.partialorder %v657, 0.0
  %vm718 = vcmp.ge.f32.partialorder %v662, 0.0
  %vm719 = vcmp.ge.f32.partialorder %v665, 0.0
  %vm720 = vcmp.ge.f32.partialorder %v670, 0.0
  %vm721 = vcmp.ge.f32.partialorder %v673, 0.0
  %vm722 = vcmp.ge.f32.partialorder %v678, 0.0
  %vm723 = vcmp.ge.f32.partialorder %v681, 0.0
  %vm724 = vcmp.ge.f32.partialorder %v686, 0.0
  %vm725 = vcmp.ge.f32.partialorder %v689, 0.0
  %vm726 = vcmp.ge.f32.partialorder %v694, 0.0
  %vm727 = vcmp.ge.f32.partialorder %v697, 0.0
  %vm728 = vcmp.ge.f32.partialorder %v702, 0.0
  %vm729 = vcmp.ge.f32.partialorder %v705, 0.0
  %vm730 = vcmp.ge.f32.partialorder %v710, 0.0
  %vm731 = vcmp.ge.f32.partialorder %v713, 0.0
  %v732 = vmul.f32 %v654, 0.01
  %v733 = vmul.f32 %v657, 0.01
  %v734 = vmul.f32 %v662, 0.01
  %v735 = vmul.f32 %v665, 0.01
  %v736 = vmul.f32 %v670, 0.01
  %v737 = vmul.f32 %v673, 0.01
  %v738 = vmul.f32 %v678, 0.01
  %v739 = vmul.f32 %v681, 0.01
  %v740 = vmul.f32 %v686, 0.01
  %v741 = vmul.f32 %v689, 0.01
  %v742 = vmul.f32 %v694, 0.01
  %v743 = vmul.f32 %v697, 0.01
  %v744 = vmul.f32 %v702, 0.01
  %v745 = vmul.f32 %v705, 0.01
  %v746 = vmul.f32 %v710, 0.01
  %v747 = vmul.f32 %v713, 0.01
  %v748 = vsel %vm716, %v654, %v732
  %v749 = vsel %vm717, %v657, %v733
  %v750 = vsel %vm718, %v662, %v734
  %v751 = vsel %vm719, %v665, %v735
  %v752 = vsel %vm720, %v670, %v736
  %v753 = vsel %vm721, %v673, %v737
  %v754 = vsel %vm722, %v678, %v738
  %v755 = vsel %vm723, %v681, %v739
  %v756 = vsel %vm724, %v686, %v740
  %v757 = vsel %vm725, %v689, %v741
  %v758 = vsel %vm726, %v694, %v742
  %v759 = vsel %vm727, %v697, %v743
  %v760 = vsel %vm728, %v702, %v744
  %v761 = vsel %vm729, %v705, %v745
  %v762 = vsel %vm730, %v710, %v746
  %v763 = vsel %vm731, %v713, %v747
  %v764 = vpack.c.bf16 %v749, %v748
  %v765 = vpack.c.bf16 %v751, %v750
  %v766 = vpack.c.bf16 %v753, %v752
  %v767 = vpack.c.bf16 %v755, %v754
  %v768 = vpack.c.bf16 %v757, %v756
  %v769 = vpack.c.bf16 %v759, %v758
  %v770 = vpack.c.bf16 %v761, %v760
  %v771 = vpack.c.bf16 %v763, %v762
  %v772 = vld [vmem:[%s6] sm:$0xf]
  %v773 = vld [vmem:[%s6 + $0x4] sm:$0xf]
  %v774 = vld [vmem:[%s6 + $0x8] sm:$0xf]
  %v775 = vld [vmem:[%s6 + $0xc] sm:$0xf]
  %v776 = vld [vmem:[%s6 + $0x10] sm:$0xf]
  %v777 = vld [vmem:[%s6 + $0x14] sm:$0xf]
  %v778 = vld [vmem:[%s6 + $0x18] sm:$0xf]
  %v779 = vld [vmem:[%s6 + $0x1c] sm:$0xf]
  %v780 = vld [vmem:[%s6 + $0x20] sm:$0xf]
  %v781 = vld [vmem:[%s6 + $0x24] sm:$0xf]
  %v782 = vld [vmem:[%s6 + $0x28] sm:$0xf]
  %v783 = vld [vmem:[%s6 + $0x2c] sm:$0xf]
  %v784 = vld [vmem:[%s6 + $0x30] sm:$0xf]
  %v785 = vld [vmem:[%s6 + $0x34] sm:$0xf]
  %v786 = vld [vmem:[%s6 + $0x38] sm:$0xf]
  %v787 = vld [vmem:[%s6 + $0x3c] sm:$0xf]
  %v804 = vunpack.c.l.b16 %v772
  %v805 = vunpack.c.l.b16 %v773
  %v806 = vunpack.c.l.b16 %v774
  %v807 = vunpack.c.l.b16 %v775
  %v808 = vunpack.c.l.b16 %v776
  %v809 = vunpack.c.l.b16 %v777
  %v810 = vunpack.c.l.b16 %v778
  %v811 = vunpack.c.l.b16 %v779
  %v812 = vunpack.c.l.b16 %v780
  %v813 = vunpack.c.l.b16 %v781
  %v814 = vunpack.c.l.b16 %v782
  %v815 = vunpack.c.l.b16 %v783
  %v816 = vunpack.c.l.b16 %v784
  %v817 = vunpack.c.l.b16 %v785
  %v818 = vunpack.c.l.b16 %v786
  %v819 = vunpack.c.l.b16 %v787
  %v820 = vpack.c.b16 %v805, %v804
  %v821 = vpack.c.b16 %v807, %v806
  %v822 = vpack.c.b16 %v809, %v808
  %v823 = vpack.c.b16 %v811, %v810
  %v824 = vpack.c.b16 %v813, %v812
  %v825 = vpack.c.b16 %v815, %v814
  %v826 = vpack.c.b16 %v817, %v816
  %v827 = vpack.c.b16 %v819, %v818
  %836 = vmatprep.subr.bf16.mxu0 0
  %837 = vmatpush1.bf16.msra.mxu0 %v820
  %838 = vmatprep.subr.bf16.mxu0 0
  %839 = vmatpush1.bf16.msra.mxu0 %v821
  %840 = vmatprep.subr.bf16.mxu0 0
  %841 = vmatpush1.bf16.msra.mxu0 %v822
  %842 = vmatprep.subr.bf16.mxu0 0
  %843 = vmatpush1.bf16.msra.mxu0 %v823
  %844 = vmatprep.subr.bf16.mxu0 0
  %845 = vmatpush1.bf16.msra.mxu0 %v824
  %846 = vmatprep.subr.bf16.mxu0 0
  %847 = vmatpush1.bf16.msra.mxu0 %v825
  %848 = vmatprep.subr.bf16.mxu0 0
  %849 = vmatpush1.bf16.msra.mxu0 %v826
  %850 = vmatprep.subr.bf16.mxu0 0
  %851 = vmatpush1.bf16.msra.mxu0 %v827
  %852 = vmatprep.subr.bf16.mxu0 0
  %853 = vmatpush1.bf16.msra.mxu0 0
  %854 = vmatprep.subr.bf16.mxu0 0
  %855 = vmatpush1.bf16.msra.mxu0 0
  %856 = vmatprep.subr.bf16.mxu0 0
  %857 = vmatpush1.bf16.msra.mxu0 0
  %858 = vmatprep.subr.bf16.mxu0 0
  %859 = vmatpush1.bf16.msra.mxu0 0
  %860 = vmatprep.subr.bf16.mxu0 0
  %861 = vmatpush1.bf16.msra.mxu0 0
  %862 = vmatprep.subr.bf16.mxu0 0
  %863 = vmatpush1.bf16.msra.mxu0 0
  %864 = vmatprep.subr.bf16.mxu0 0
  %865 = vmatpush1.bf16.msra.mxu0 0
  %866 = vmatprep.subr.bf16.mxu0 0
  %867 = vmatpush1.bf16.msra.mxu0 0
  %868 = vmatprep.mubr.bf16.mxu0 0
  %869 = vmatmul.mubr.bf16.gmra.mrb[0].mxu0 %v764
  %v870 = vpop.f32.mrb[0].mxu0
  %v871 = vadd.f32 0.0, %v870
  %v872 = vpop.f32.mrb[0].mxu0
  %v873 = vpop.f32.mrb[0].mxu0
  %v874 = vadd.f32 0.0, %v873
  %v875 = vpop.f32.mrb[0].mxu0
  %876 = vmatprep.mubr.bf16.mxu0 0
  %877 = vmatmul.mubr.bf16.gmra.mrb[0].mxu0 %v765
  %v878 = vpop.f32.mrb[0].mxu0
  %v879 = vadd.f32 0.0, %v878
  %v880 = vpop.f32.mrb[0].mxu0
  %v881 = vpop.f32.mrb[0].mxu0
  %v882 = vadd.f32 0.0, %v881
  %v883 = vpop.f32.mrb[0].mxu0
  %884 = vmatprep.mubr.bf16.mxu0 0
  %885 = vmatmul.mubr.bf16.gmra.mrb[0].mxu0 %v766
  %v886 = vpop.f32.mrb[0].mxu0
  %v887 = vadd.f32 0.0, %v886
  %v888 = vpop.f32.mrb[0].mxu0
  %v889 = vpop.f32.mrb[0].mxu0
  %v890 = vadd.f32 0.0, %v889
  %v891 = vpop.f32.mrb[0].mxu0
  %892 = vmatprep.mubr.bf16.mxu0 0
  %893 = vmatmul.mubr.bf16.gmra.mrb[0].mxu0 %v767
  %v894 = vpop.f32.mrb[0].mxu0
  %v895 = vadd.f32 0.0, %v894
  %v896 = vpop.f32.mrb[0].mxu0
  %v897 = vpop.f32.mrb[0].mxu0
  %v898 = vadd.f32 0.0, %v897
  %v899 = vpop.f32.mrb[0].mxu0
  %900 = vmatprep.mubr.bf16.mxu0 0
  %901 = vmatmul.mubr.bf16.gmra.mrb[0].mxu0 %v768
  %v902 = vpop.f32.mrb[0].mxu0
  %v903 = vadd.f32 0.0, %v902
  %v904 = vpop.f32.mrb[0].mxu0
  %v905 = vpop.f32.mrb[0].mxu0
  %v906 = vadd.f32 0.0, %v905
  %v907 = vpop.f32.mrb[0].mxu0
  %908 = vmatprep.mubr.bf16.mxu0 0
  %909 = vmatmul.mubr.bf16.gmra.mrb[0].mxu0 %v769
  %v910 = vpop.f32.mrb[0].mxu0
  %v911 = vadd.f32 0.0, %v910
  %v912 = vpop.f32.mrb[0].mxu0
  %v913 = vpop.f32.mrb[0].mxu0
  %v914 = vadd.f32 0.0, %v913
  %v915 = vpop.f32.mrb[0].mxu0
  %916 = vmatprep.mubr.bf16.mxu0 0
  %917 = vmatmul.mubr.bf16.gmra.mrb[0].mxu0 %v770
  %v918 = vpop.f32.mrb[0].mxu0
  %v919 = vadd.f32 0.0, %v918
  %v920 = vpop.f32.mrb[0].mxu0
  %v921 = vpop.f32.mrb[0].mxu0
  %v922 = vadd.f32 0.0, %v921
  %v923 = vpop.f32.mrb[0].mxu0
  %924 = vmatprep.mubr.bf16.mxu0 0
  %925 = vmatmul.mubr.bf16.gmra.mrb[0].mxu0 %v771
  %v926 = vpop.f32.mrb[0].mxu0
  %v927 = vadd.f32 0.0, %v926
  %v928 = vpop.f32.mrb[0].mxu0
  %v929 = vpop.f32.mrb[0].mxu0
  %v930 = vadd.f32 0.0, %v929
  %v931 = vpop.f32.mrb[0].mxu0
  %932 = vdwg.mxu0
  %v933 = vpack.c.bf16 %v874, %v871
  %v934 = vpack.c.bf16 %v882, %v879
  %v935 = vpack.c.bf16 %v890, %v887
  %v936 = vpack.c.bf16 %v898, %v895
  %v937 = vpack.c.bf16 %v906, %v903
  %v938 = vpack.c.bf16 %v914, %v911
  %v939 = vpack.c.bf16 %v922, %v919
  %v940 = vpack.c.bf16 %v930, %v927
  %v941 = vld [vmem:[%s7] sm:$0x1]
  %v943 = vlaneseq
  %v944 = vshrl.u32 %v943, 7
  %v945 = vsub.s32 0, %v944
  %v946 = vrot.slane %v941, %v945
  %948 = vmatprep.subr.bf16.mxu0 0
  %949 = vmatpush1.bf16.msra.mxu0 %v933
  %950 = vmatprep.subr.bf16.mxu0 0
  %951 = vmatpush1.bf16.msra.mxu0 %v934
  %952 = vmatprep.subr.bf16.mxu0 0
  %953 = vmatpush1.bf16.msra.mxu0 %v935
  %954 = vmatprep.subr.bf16.mxu0 0
  %955 = vmatpush1.bf16.msra.mxu0 %v936
  %956 = vmatprep.subr.bf16.mxu0 0
  %957 = vmatpush1.bf16.msra.mxu0 %v937
  %958 = vmatprep.subr.bf16.mxu0 0
  %959 = vmatpush1.bf16.msra.mxu0 %v938
  %960 = vmatprep.subr.bf16.mxu0 0
  %961 = vmatpush1.bf16.msra.mxu0 %v939
  %962 = vmatprep.subr.bf16.mxu0 0
  %963 = vmatpush1.bf16.msra.mxu0 %v940
  %964 = vmatprep.subr.bf16.mxu0 0
  %965 = vmatpush1.bf16.msra.mxu0 0
  %966 = vmatprep.subr.bf16.mxu0 0
  %967 = vmatpush1.bf16.msra.mxu0 0
  %968 = vmatprep.subr.bf16.mxu0 0
  %969 = vmatpush1.bf16.msra.mxu0 0
  %970 = vmatprep.subr.bf16.mxu0 0
  %971 = vmatpush1.bf16.msra.mxu0 0
  %972 = vmatprep.subr.bf16.mxu0 0
  %973 = vmatpush1.bf16.msra.mxu0 0
  %974 = vmatprep.subr.bf16.mxu0 0
  %975 = vmatpush1.bf16.msra.mxu0 0
  %976 = vmatprep.subr.bf16.mxu0 0
  %977 = vmatpush1.bf16.msra.mxu0 0
  %978 = vmatprep.subr.bf16.mxu0 0
  %979 = vmatpush1.bf16.msra.mxu0 0
  %980 = vmatprep.mubr.bf16.mxu0 0
  %981 = vmatmul.mubr.bf16.gmra.mrb[0].mxu0 %v297
  %v982 = vpop.f32.mrb[0].mxu0
  %v983 = vadd.f32 %v946, %v982
  %v984 = vpop.f32.mrb[0].mxu0
  %v985 = vpop.f32.mrb[0].mxu0
  %v986 = vadd.f32 %v946, %v985
  %v987 = vpop.f32.mrb[0].mxu0
  %988 = vmatprep.mubr.bf16.mxu0 0
  %989 = vmatmul.mubr.bf16.gmra.mrb[0].mxu0 %v298
  %v990 = vpop.f32.mrb[0].mxu0
  %v991 = vadd.f32 %v946, %v990
  %v992 = vpop.f32.mrb[0].mxu0
  %v993 = vpop.f32.mrb[0].mxu0
  %v994 = vadd.f32 %v946, %v993
  %v995 = vpop.f32.mrb[0].mxu0
  %996 = vmatprep.mubr.bf16.mxu0 0
  %997 = vmatmul.mubr.bf16.gmra.mrb[0].mxu0 %v299
  %v998 = vpop.f32.mrb[0].mxu0
  %v999 = vadd.f32 %v946, %v998
  %v1000 = vpop.f32.mrb[0].mxu0
  %v1001 = vpop.f32.mrb[0].mxu0
  %v1002 = vadd.f32 %v946, %v1001
  %v1003 = vpop.f32.mrb[0].mxu0
  %1004 = vmatprep.mubr.bf16.mxu0 0
  %1005 = vmatmul.mubr.bf16.gmra.mrb[0].mxu0 %v300
  %v1006 = vpop.f32.mrb[0].mxu0
  %v1007 = vadd.f32 %v946, %v1006
  %v1008 = vpop.f32.mrb[0].mxu0
  %v1009 = vpop.f32.mrb[0].mxu0
  %v1010 = vadd.f32 %v946, %v1009
  %v1011 = vpop.f32.mrb[0].mxu0
  %1012 = vmatprep.mubr.bf16.mxu0 0
  %1013 = vmatmul.mubr.bf16.gmra.mrb[0].mxu0 %v301
  %v1014 = vpop.f32.mrb[0].mxu0
  %v1015 = vadd.f32 %v946, %v1014
  %v1016 = vpop.f32.mrb[0].mxu0
  %v1017 = vpop.f32.mrb[0].mxu0
  %v1018 = vadd.f32 %v946, %v1017
  %v1019 = vpop.f32.mrb[0].mxu0
  %1020 = vmatprep.mubr.bf16.mxu0 0
  %1021 = vmatmul.mubr.bf16.gmra.mrb[0].mxu0 %v302
  %v1022 = vpop.f32.mrb[0].mxu0
  %v1023 = vadd.f32 %v946, %v1022
  %v1024 = vpop.f32.mrb[0].mxu0
  %v1025 = vpop.f32.mrb[0].mxu0
  %v1026 = vadd.f32 %v946, %v1025
  %v1027 = vpop.f32.mrb[0].mxu0
  %1028 = vmatprep.mubr.bf16.mxu0 0
  %1029 = vmatmul.mubr.bf16.gmra.mrb[0].mxu0 %v303
  %v1030 = vpop.f32.mrb[0].mxu0
  %v1031 = vadd.f32 %v946, %v1030
  %v1032 = vpop.f32.mrb[0].mxu0
  %v1033 = vpop.f32.mrb[0].mxu0
  %v1034 = vadd.f32 %v946, %v1033
  %v1035 = vpop.f32.mrb[0].mxu0
  %1036 = vmatprep.mubr.bf16.mxu0 0
  %1037 = vmatmul.mubr.bf16.gmra.mrb[0].mxu0 %v304
  %v1038 = vpop.f32.mrb[0].mxu0
  %v1039 = vadd.f32 %v946, %v1038
  %v1040 = vpop.f32.mrb[0].mxu0
  %v1041 = vpop.f32.mrb[0].mxu0
  %v1042 = vadd.f32 %v946, %v1041
  %v1043 = vpop.f32.mrb[0].mxu0
  %1044 = vdwg.mxu0
  %vm1045 = vcmp.ge.f32.partialorder %v983, 0.0
  %vm1046 = vcmp.ge.f32.partialorder %v986, 0.0
  %vm1047 = vcmp.ge.f32.partialorder %v991, 0.0
  %vm1048 = vcmp.ge.f32.partialorder %v994, 0.0
  %vm1049 = vcmp.ge.f32.partialorder %v999, 0.0
  %vm1050 = vcmp.ge.f32.partialorder %v1002, 0.0
  %vm1051 = vcmp.ge.f32.partialorder %v1007, 0.0
  %vm1052 = vcmp.ge.f32.partialorder %v1010, 0.0
  %vm1053 = vcmp.ge.f32.partialorder %v1015, 0.0
  %vm1054 = vcmp.ge.f32.partialorder %v1018, 0.0
  %vm1055 = vcmp.ge.f32.partialorder %v1023, 0.0
  %vm1056 = vcmp.ge.f32.partialorder %v1026, 0.0
  %vm1057 = vcmp.ge.f32.partialorder %v1031, 0.0
  %vm1058 = vcmp.ge.f32.partialorder %v1034, 0.0
  %vm1059 = vcmp.ge.f32.partialorder %v1039, 0.0
  %vm1060 = vcmp.ge.f32.partialorder %v1042, 0.0
  %v1061 = vmul.f32 %v983, 0.01
  %v1062 = vmul.f32 %v986, 0.01
  %v1063 = vmul.f32 %v991, 0.01
  %v1064 = vmul.f32 %v994, 0.01
  %v1065 = vmul.f32 %v999, 0.01
  %v1066 = vmul.f32 %v1002, 0.01
  %v1067 = vmul.f32 %v1007, 0.01
  %v1068 = vmul.f32 %v1010, 0.01
  %v1069 = vmul.f32 %v1015, 0.01
  %v1070 = vmul.f32 %v1018, 0.01
  %v1071 = vmul.f32 %v1023, 0.01
  %v1072 = vmul.f32 %v1026, 0.01
  %v1073 = vmul.f32 %v1031, 0.01
  %v1074 = vmul.f32 %v1034, 0.01
  %v1075 = vmul.f32 %v1039, 0.01
  %v1076 = vmul.f32 %v1042, 0.01
  %v1077 = vsel %vm1045, %v983, %v1061
  %v1078 = vsel %vm1046, %v986, %v1062
  %v1079 = vsel %vm1047, %v991, %v1063
  %v1080 = vsel %vm1048, %v994, %v1064
  %v1081 = vsel %vm1049, %v999, %v1065
  %v1082 = vsel %vm1050, %v1002, %v1066
  %v1083 = vsel %vm1051, %v1007, %v1067
  %v1084 = vsel %vm1052, %v1010, %v1068
  %v1085 = vsel %vm1053, %v1015, %v1069
  %v1086 = vsel %vm1054, %v1018, %v1070
  %v1087 = vsel %vm1055, %v1023, %v1071
  %v1088 = vsel %vm1056, %v1026, %v1072
  %v1089 = vsel %vm1057, %v1031, %v1073
  %v1090 = vsel %vm1058, %v1034, %v1074
  %v1091 = vsel %vm1059, %v1039, %v1075
  %v1092 = vsel %vm1060, %v1042, %v1076
  %v1093 = vpack.c.bf16 %v1078, %v1077
  %v1094 = vpack.c.bf16 %v1080, %v1079
  %v1095 = vpack.c.bf16 %v1082, %v1081
  %v1096 = vpack.c.bf16 %v1084, %v1083
  %v1097 = vpack.c.bf16 %v1086, %v1085
  %v1098 = vpack.c.bf16 %v1088, %v1087
  %v1099 = vpack.c.bf16 %v1090, %v1089
  %v1100 = vpack.c.bf16 %v1092, %v1091
  %1101 = vmatprep.subr.bf16.mxu0 0
  %1102 = vmatpush1.bf16.msra.mxu0 %v1093
  %1103 = vmatprep.subr.bf16.mxu0 0
  %1104 = vmatpush1.bf16.msra.mxu0 %v1094
  %1105 = vmatprep.subr.bf16.mxu0 0
  %1106 = vmatpush1.bf16.msra.mxu0 %v1095
  %1107 = vmatprep.subr.bf16.mxu0 0
  %1108 = vmatpush1.bf16.msra.mxu0 %v1096
  %1109 = vmatprep.subr.bf16.mxu0 0
  %1110 = vmatpush1.bf16.msra.mxu0 %v1097
  %1111 = vmatprep.subr.bf16.mxu0 0
  %1112 = vmatpush1.bf16.msra.mxu0 %v1098
  %1113 = vmatprep.subr.bf16.mxu0 0
  %1114 = vmatpush1.bf16.msra.mxu0 %v1099
  %1115 = vmatprep.subr.bf16.mxu0 0
  %1116 = vmatpush1.bf16.msra.mxu0 %v1100
  %1117 = vmatprep.subr.bf16.mxu0 0
  %1118 = vmatpush1.bf16.msra.mxu0 0
  %1119 = vmatprep.subr.bf16.mxu0 0
  %1120 = vmatpush1.bf16.msra.mxu0 0
  %1121 = vmatprep.subr.bf16.mxu0 0
  %1122 = vmatpush1.bf16.msra.mxu0 0
  %1123 = vmatprep.subr.bf16.mxu0 0
  %1124 = vmatpush1.bf16.msra.mxu0 0
  %1125 = vmatprep.subr.bf16.mxu0 0
  %1126 = vmatpush1.bf16.msra.mxu0 0
  %1127 = vmatprep.subr.bf16.mxu0 0
  %1128 = vmatpush1.bf16.msra.mxu0 0
  %1129 = vmatprep.subr.bf16.mxu0 0
  %1130 = vmatpush1.bf16.msra.mxu0 0
  %1131 = vmatprep.subr.bf16.mxu0 0
  %1132 = vmatpush1.bf16.msra.mxu0 0
  %1133 = vmatprep.mubr.bf16.mxu0 0
  %1134 = vmatmul.mubr.bf16.gmra.mrb[0].mxu0 %v297
  %v1135 = vpop.f32.mrb[0].mxu0
  %v1136 = vadd.f32 0.0, %v1135
  %v1137 = vpop.f32.mrb[0].mxu0
  %v1138 = vpop.f32.mrb[0].mxu0
  %v1139 = vadd.f32 0.0, %v1138
  %v1140 = vpop.f32.mrb[0].mxu0
  %1141 = vmatprep.mubr.bf16.mxu0 0
  %1142 = vmatmul.mubr.bf16.gmra.mrb[0].mxu0 %v298
  %v1143 = vpop.f32.mrb[0].mxu0
  %v1144 = vadd.f32 0.0, %v1143
  %v1145 = vpop.f32.mrb[0].mxu0
  %v1146 = vpop.f32.mrb[0].mxu0
  %v1147 = vadd.f32 0.0, %v1146
  %v1148 = vpop.f32.mrb[0].mxu0
  %1149 = vmatprep.mubr.bf16.mxu0 0
  %1150 = vmatmul.mubr.bf16.gmra.mrb[0].mxu0 %v299
  %v1151 = vpop.f32.mrb[0].mxu0
  %v1152 = vadd.f32 0.0, %v1151
  %v1153 = vpop.f32.mrb[0].mxu0
  %v1154 = vpop.f32.mrb[0].mxu0
  %v1155 = vadd.f32 0.0, %v1154
  %v1156 = vpop.f32.mrb[0].mxu0
  %1157 = vmatprep.mubr.bf16.mxu0 0
  %1158 = vmatmul.mubr.bf16.gmra.mrb[0].mxu0 %v300
  %v1159 = vpop.f32.mrb[0].mxu0
  %v1160 = vadd.f32 0.0, %v1159
  %v1161 = vpop.f32.mrb[0].mxu0
  %v1162 = vpop.f32.mrb[0].mxu0
  %v1163 = vadd.f32 0.0, %v1162
  %v1164 = vpop.f32.mrb[0].mxu0
  %1165 = vmatprep.mubr.bf16.mxu0 0
  %1166 = vmatmul.mubr.bf16.gmra.mrb[0].mxu0 %v301
  %v1167 = vpop.f32.mrb[0].mxu0
  %v1168 = vadd.f32 0.0, %v1167
  %v1169 = vpop.f32.mrb[0].mxu0
  %v1170 = vpop.f32.mrb[0].mxu0
  %v1171 = vadd.f32 0.0, %v1170
  %v1172 = vpop.f32.mrb[0].mxu0
  %1173 = vmatprep.mubr.bf16.mxu0 0
  %1174 = vmatmul.mubr.bf16.gmra.mrb[0].mxu0 %v302
  %v1175 = vpop.f32.mrb[0].mxu0
  %v1176 = vadd.f32 0.0, %v1175
  %v1177 = vpop.f32.mrb[0].mxu0
  %v1178 = vpop.f32.mrb[0].mxu0
  %v1179 = vadd.f32 0.0, %v1178
  %v1180 = vpop.f32.mrb[0].mxu0
  %1181 = vmatprep.mubr.bf16.mxu0 0
  %1182 = vmatmul.mubr.bf16.gmra.mrb[0].mxu0 %v303
  %v1183 = vpop.f32.mrb[0].mxu0
  %v1184 = vadd.f32 0.0, %v1183
  %v1185 = vpop.f32.mrb[0].mxu0
  %v1186 = vpop.f32.mrb[0].mxu0
  %v1187 = vadd.f32 0.0, %v1186
  %v1188 = vpop.f32.mrb[0].mxu0
  %1189 = vmatprep.mubr.bf16.mxu0 0
  %1190 = vmatmul.mubr.bf16.gmra.mrb[0].mxu0 %v304
  %v1191 = vpop.f32.mrb[0].mxu0
  %v1192 = vadd.f32 0.0, %v1191
  %v1193 = vpop.f32.mrb[0].mxu0
  %v1194 = vpop.f32.mrb[0].mxu0
  %v1195 = vadd.f32 0.0, %v1194
  %v1196 = vpop.f32.mrb[0].mxu0
  %1197 = vdwg.mxu0
  %v1198 = vpack.c.bf16 %v1139, %v1136
  %v1199 = vpack.c.bf16 %v1147, %v1144
  %v1200 = vpack.c.bf16 %v1155, %v1152
  %v1201 = vpack.c.bf16 %v1163, %v1160
  %v1202 = vpack.c.bf16 %v1171, %v1168
  %v1203 = vpack.c.bf16 %v1179, %v1176
  %v1204 = vpack.c.bf16 %v1187, %v1184
  %v1205 = vpack.c.bf16 %v1195, %v1192
  %v1206 = vld [vmem:[%s8] sm:$0xf]
  %v1207 = vld [vmem:[%s8 + $0x4] sm:$0xf]
  %v1208 = vld [vmem:[%s8 + $0x8] sm:$0xf]
  %v1209 = vld [vmem:[%s8 + $0xc] sm:$0xf]
  %v1210 = vld [vmem:[%s8 + $0x10] sm:$0xf]
  %v1211 = vld [vmem:[%s8 + $0x14] sm:$0xf]
  %v1212 = vld [vmem:[%s8 + $0x18] sm:$0xf]
  %v1213 = vld [vmem:[%s8 + $0x1c] sm:$0xf]
  %v1214 = vld [vmem:[%s8 + $0x20] sm:$0xf]
  %v1215 = vld [vmem:[%s8 + $0x24] sm:$0xf]
  %v1216 = vld [vmem:[%s8 + $0x28] sm:$0xf]
  %v1217 = vld [vmem:[%s8 + $0x2c] sm:$0xf]
  %v1218 = vld [vmem:[%s8 + $0x30] sm:$0xf]
  %v1219 = vld [vmem:[%s8 + $0x34] sm:$0xf]
  %v1220 = vld [vmem:[%s8 + $0x38] sm:$0xf]
  %v1221 = vld [vmem:[%s8 + $0x3c] sm:$0xf]
  %v1222 = vld [vmem:[%s9] sm:$0x1]
  %v1224 = vlaneseq
  %v1225 = vshrl.u32 %v1224, 7
  %v1226 = vsub.s32 0, %v1225
  %v1227 = vrot.slane %v1222, %v1226
  %v1245 = vunpack.c.l.b16 %v1206
  %v1246 = vunpack.c.l.b16 %v1207
  %v1247 = vunpack.c.l.b16 %v1208
  %v1248 = vunpack.c.l.b16 %v1209
  %v1249 = vunpack.c.l.b16 %v1210
  %v1250 = vunpack.c.l.b16 %v1211
  %v1251 = vunpack.c.l.b16 %v1212
  %v1252 = vunpack.c.l.b16 %v1213
  %v1253 = vunpack.c.l.b16 %v1214
  %v1254 = vunpack.c.l.b16 %v1215
  %v1255 = vunpack.c.l.b16 %v1216
  %v1256 = vunpack.c.l.b16 %v1217
  %v1257 = vunpack.c.l.b16 %v1218
  %v1258 = vunpack.c.l.b16 %v1219
  %v1259 = vunpack.c.l.b16 %v1220
  %v1260 = vunpack.c.l.b16 %v1221
  %v1261 = vpack.c.b16 %v1246, %v1245
  %v1262 = vpack.c.b16 %v1248, %v1247
  %v1263 = vpack.c.b16 %v1250, %v1249
  %v1264 = vpack.c.b16 %v1252, %v1251
  %v1265 = vpack.c.b16 %v1254, %v1253
  %v1266 = vpack.c.b16 %v1256, %v1255
  %v1267 = vpack.c.b16 %v1258, %v1257
  %v1268 = vpack.c.b16 %v1260, %v1259
  %1277 = vmatprep.subr.bf16.mxu0 0
  %1278 = vmatpush1.bf16.msra.mxu0 %v1261
  %1279 = vmatprep.subr.bf16.mxu0 0
  %1280 = vmatpush1.bf16.msra.mxu0 %v1262
  %1281 = vmatprep.subr.bf16.mxu0 0
  %1282 = vmatpush1.bf16.msra.mxu0 %v1263
  %1283 = vmatprep.subr.bf16.mxu0 0
  %1284 = vmatpush1.bf16.msra.mxu0 %v1264
  %1285 = vmatprep.subr.bf16.mxu0 0
  %1286 = vmatpush1.bf16.msra.mxu0 %v1265
  %1287 = vmatprep.subr.bf16.mxu0 0
  %1288 = vmatpush1.bf16.msra.mxu0 %v1266
  %1289 = vmatprep.subr.bf16.mxu0 0
  %1290 = vmatpush1.bf16.msra.mxu0 %v1267
  %1291 = vmatprep.subr.bf16.mxu0 0
  %1292 = vmatpush1.bf16.msra.mxu0 %v1268
  %1293 = vmatprep.subr.bf16.mxu0 0
  %1294 = vmatpush1.bf16.msra.mxu0 0
  %1295 = vmatprep.subr.bf16.mxu0 0
  %1296 = vmatpush1.bf16.msra.mxu0 0
  %1297 = vmatprep.subr.bf16.mxu0 0
  %1298 = vmatpush1.bf16.msra.mxu0 0
  %1299 = vmatprep.subr.bf16.mxu0 0
  %1300 = vmatpush1.bf16.msra.mxu0 0
  %1301 = vmatprep.subr.bf16.mxu0 0
  %1302 = vmatpush1.bf16.msra.mxu0 0
  %1303 = vmatprep.subr.bf16.mxu0 0
  %1304 = vmatpush1.bf16.msra.mxu0 0
  %1305 = vmatprep.subr.bf16.mxu0 0
  %1306 = vmatpush1.bf16.msra.mxu0 0
  %1307 = vmatprep.subr.bf16.mxu0 0
  %1308 = vmatpush1.bf16.msra.mxu0 0
  %1309 = vmatprep.mubr.bf16.mxu0 0
  %1310 = vmatmul.mubr.bf16.gmra.mrb[0].mxu0 %v1198
  %v1311 = vpop.f32.mrb[0].mxu0
  %v1312 = vadd.f32 %v1227, %v1311
  %v1313 = vpop.f32.mrb[0].mxu0
  %v1314 = vpop.f32.mrb[0].mxu0
  %v1315 = vadd.f32 %v1227, %v1314
  %v1316 = vpop.f32.mrb[0].mxu0
  %1317 = vmatprep.mubr.bf16.mxu0 0
  %1318 = vmatmul.mubr.bf16.gmra.mrb[0].mxu0 %v1199
  %v1319 = vpop.f32.mrb[0].mxu0
  %v1320 = vadd.f32 %v1227, %v1319
  %v1321 = vpop.f32.mrb[0].mxu0
  %v1322 = vpop.f32.mrb[0].mxu0
  %v1323 = vadd.f32 %v1227, %v1322
  %v1324 = vpop.f32.mrb[0].mxu0
  %1325 = vmatprep.mubr.bf16.mxu0 0
  %1326 = vmatmul.mubr.bf16.gmra.mrb[0].mxu0 %v1200
  %v1327 = vpop.f32.mrb[0].mxu0
  %v1328 = vadd.f32 %v1227, %v1327
  %v1329 = vpop.f32.mrb[0].mxu0
  %v1330 = vpop.f32.mrb[0].mxu0
  %v1331 = vadd.f32 %v1227, %v1330
  %v1332 = vpop.f32.mrb[0].mxu0
  %1333 = vmatprep.mubr.bf16.mxu0 0
  %1334 = vmatmul.mubr.bf16.gmra.mrb[0].mxu0 %v1201
  %v1335 = vpop.f32.mrb[0].mxu0
  %v1336 = vadd.f32 %v1227, %v1335
  %v1337 = vpop.f32.mrb[0].mxu0
  %v1338 = vpop.f32.mrb[0].mxu0
  %v1339 = vadd.f32 %v1227, %v1338
  %v1340 = vpop.f32.mrb[0].mxu0
  %1341 = vmatprep.mubr.bf16.mxu0 0
  %1342 = vmatmul.mubr.bf16.gmra.mrb[0].mxu0 %v1202
  %v1343 = vpop.f32.mrb[0].mxu0
  %v1344 = vadd.f32 %v1227, %v1343
  %v1345 = vpop.f32.mrb[0].mxu0
  %v1346 = vpop.f32.mrb[0].mxu0
  %v1347 = vadd.f32 %v1227, %v1346
  %v1348 = vpop.f32.mrb[0].mxu0
  %1349 = vmatprep.mubr.bf16.mxu0 0
  %1350 = vmatmul.mubr.bf16.gmra.mrb[0].mxu0 %v1203
  %v1351 = vpop.f32.mrb[0].mxu0
  %v1352 = vadd.f32 %v1227, %v1351
  %v1353 = vpop.f32.mrb[0].mxu0
  %v1354 = vpop.f32.mrb[0].mxu0
  %v1355 = vadd.f32 %v1227, %v1354
  %v1356 = vpop.f32.mrb[0].mxu0
  %1357 = vmatprep.mubr.bf16.mxu0 0
  %1358 = vmatmul.mubr.bf16.gmra.mrb[0].mxu0 %v1204
  %v1359 = vpop.f32.mrb[0].mxu0
  %v1360 = vadd.f32 %v1227, %v1359
  %v1361 = vpop.f32.mrb[0].mxu0
  %v1362 = vpop.f32.mrb[0].mxu0
  %v1363 = vadd.f32 %v1227, %v1362
  %v1364 = vpop.f32.mrb[0].mxu0
  %1365 = vmatprep.mubr.bf16.mxu0 0
  %1366 = vmatmul.mubr.bf16.gmra.mrb[0].mxu0 %v1205
  %v1367 = vpop.f32.mrb[0].mxu0
  %v1368 = vadd.f32 %v1227, %v1367
  %v1369 = vpop.f32.mrb[0].mxu0
  %v1370 = vpop.f32.mrb[0].mxu0
  %v1371 = vadd.f32 %v1227, %v1370
  %v1372 = vpop.f32.mrb[0].mxu0
  %1373 = vdwg.mxu0
  %vm1374 = vcmp.ge.f32.partialorder %v1312, 0.0
  %vm1375 = vcmp.ge.f32.partialorder %v1315, 0.0
  %vm1376 = vcmp.ge.f32.partialorder %v1320, 0.0
  %vm1377 = vcmp.ge.f32.partialorder %v1323, 0.0
  %vm1378 = vcmp.ge.f32.partialorder %v1328, 0.0
  %vm1379 = vcmp.ge.f32.partialorder %v1331, 0.0
  %vm1380 = vcmp.ge.f32.partialorder %v1336, 0.0
  %vm1381 = vcmp.ge.f32.partialorder %v1339, 0.0
  %vm1382 = vcmp.ge.f32.partialorder %v1344, 0.0
  %vm1383 = vcmp.ge.f32.partialorder %v1347, 0.0
  %vm1384 = vcmp.ge.f32.partialorder %v1352, 0.0
  %vm1385 = vcmp.ge.f32.partialorder %v1355, 0.0
  %vm1386 = vcmp.ge.f32.partialorder %v1360, 0.0
  %vm1387 = vcmp.ge.f32.partialorder %v1363, 0.0
  %vm1388 = vcmp.ge.f32.partialorder %v1368, 0.0
  %vm1389 = vcmp.ge.f32.partialorder %v1371, 0.0
  %v1390 = vmul.f32 %v1312, 0.01
  %v1391 = vmul.f32 %v1315, 0.01
  %v1392 = vmul.f32 %v1320, 0.01
  %v1393 = vmul.f32 %v1323, 0.01
  %v1394 = vmul.f32 %v1328, 0.01
  %v1395 = vmul.f32 %v1331, 0.01
  %v1396 = vmul.f32 %v1336, 0.01
  %v1397 = vmul.f32 %v1339, 0.01
  %v1398 = vmul.f32 %v1344, 0.01
  %v1399 = vmul.f32 %v1347, 0.01
  %v1400 = vmul.f32 %v1352, 0.01
  %v1401 = vmul.f32 %v1355, 0.01
  %v1402 = vmul.f32 %v1360, 0.01
  %v1403 = vmul.f32 %v1363, 0.01
  %v1404 = vmul.f32 %v1368, 0.01
  %v1405 = vmul.f32 %v1371, 0.01
  %v1406 = vsel %vm1374, %v1312, %v1390
  %v1407 = vsel %vm1375, %v1315, %v1391
  %v1408 = vsel %vm1376, %v1320, %v1392
  %v1409 = vsel %vm1377, %v1323, %v1393
  %v1410 = vsel %vm1378, %v1328, %v1394
  %v1411 = vsel %vm1379, %v1331, %v1395
  %v1412 = vsel %vm1380, %v1336, %v1396
  %v1413 = vsel %vm1381, %v1339, %v1397
  %v1414 = vsel %vm1382, %v1344, %v1398
  %v1415 = vsel %vm1383, %v1347, %v1399
  %v1416 = vsel %vm1384, %v1352, %v1400
  %v1417 = vsel %vm1385, %v1355, %v1401
  %v1418 = vsel %vm1386, %v1360, %v1402
  %v1419 = vsel %vm1387, %v1363, %v1403
  %v1420 = vsel %vm1388, %v1368, %v1404
  %v1421 = vsel %vm1389, %v1371, %v1405
  %v1422 = vpack.c.bf16 %v1407, %v1406
  %v1423 = vpack.c.bf16 %v1409, %v1408
  %v1424 = vpack.c.bf16 %v1411, %v1410
  %v1425 = vpack.c.bf16 %v1413, %v1412
  %v1426 = vpack.c.bf16 %v1415, %v1414
  %v1427 = vpack.c.bf16 %v1417, %v1416
  %v1428 = vpack.c.bf16 %v1419, %v1418
  %v1429 = vpack.c.bf16 %v1421, %v1420
  %1430 = vmatprep.subr.bf16.mxu0 0
  %1431 = vmatpush1.bf16.msra.mxu0 %v1422
  %1432 = vmatprep.subr.bf16.mxu0 0
  %1433 = vmatpush1.bf16.msra.mxu0 %v1423
  %1434 = vmatprep.subr.bf16.mxu0 0
  %1435 = vmatpush1.bf16.msra.mxu0 %v1424
  %1436 = vmatprep.subr.bf16.mxu0 0
  %1437 = vmatpush1.bf16.msra.mxu0 %v1425
  %1438 = vmatprep.subr.bf16.mxu0 0
  %1439 = vmatpush1.bf16.msra.mxu0 %v1426
  %1440 = vmatprep.subr.bf16.mxu0 0
  %1441 = vmatpush1.bf16.msra.mxu0 %v1427
  %1442 = vmatprep.subr.bf16.mxu0 0
  %1443 = vmatpush1.bf16.msra.mxu0 %v1428
  %1444 = vmatprep.subr.bf16.mxu0 0
  %1445 = vmatpush1.bf16.msra.mxu0 %v1429
  %1446 = vmatprep.subr.bf16.mxu0 0
  %1447 = vmatpush1.bf16.msra.mxu0 0
  %1448 = vmatprep.subr.bf16.mxu0 0
  %1449 = vmatpush1.bf16.msra.mxu0 0
  %1450 = vmatprep.subr.bf16.mxu0 0
  %1451 = vmatpush1.bf16.msra.mxu0 0
  %1452 = vmatprep.subr.bf16.mxu0 0
  %1453 = vmatpush1.bf16.msra.mxu0 0
  %1454 = vmatprep.subr.bf16.mxu0 0
  %1455 = vmatpush1.bf16.msra.mxu0 0
  %1456 = vmatprep.subr.bf16.mxu0 0
  %1457 = vmatpush1.bf16.msra.mxu0 0
  %1458 = vmatprep.subr.bf16.mxu0 0
  %1459 = vmatpush1.bf16.msra.mxu0 0
  %1460 = vmatprep.subr.bf16.mxu0 0
  %1461 = vmatpush1.bf16.msra.mxu0 0
  %1462 = vmatprep.mubr.bf16.mxu0 0
  %1463 = vmatmul.mubr.bf16.gmra.mrb[0].mxu0 %v297
  %v1464 = vpop.f32.mrb[0].mxu0
  %v1465 = vadd.f32 0.0, %v1464
  %v1466 = vpop.f32.mrb[0].mxu0
  %v1467 = vpop.f32.mrb[0].mxu0
  %v1468 = vadd.f32 0.0, %v1467
  %v1469 = vpop.f32.mrb[0].mxu0
  %1470 = vmatprep.mubr.bf16.mxu0 0
  %1471 = vmatmul.mubr.bf16.gmra.mrb[0].mxu0 %v298
  %v1472 = vpop.f32.mrb[0].mxu0
  %v1473 = vadd.f32 0.0, %v1472
  %v1474 = vpop.f32.mrb[0].mxu0
  %v1475 = vpop.f32.mrb[0].mxu0
  %v1476 = vadd.f32 0.0, %v1475
  %v1477 = vpop.f32.mrb[0].mxu0
  %1478 = vmatprep.mubr.bf16.mxu0 0
  %1479 = vmatmul.mubr.bf16.gmra.mrb[0].mxu0 %v299
  %v1480 = vpop.f32.mrb[0].mxu0
  %v1481 = vadd.f32 0.0, %v1480
  %v1482 = vpop.f32.mrb[0].mxu0
  %v1483 = vpop.f32.mrb[0].mxu0
  %v1484 = vadd.f32 0.0, %v1483
  %v1485 = vpop.f32.mrb[0].mxu0
  %1486 = vmatprep.mubr.bf16.mxu0 0
  %1487 = vmatmul.mubr.bf16.gmra.mrb[0].mxu0 %v300
  %v1488 = vpop.f32.mrb[0].mxu0
  %v1489 = vadd.f32 0.0, %v1488
  %v1490 = vpop.f32.mrb[0].mxu0
  %v1491 = vpop.f32.mrb[0].mxu0
  %v1492 = vadd.f32 0.0, %v1491
  %v1493 = vpop.f32.mrb[0].mxu0
  %1494 = vmatprep.mubr.bf16.mxu0 0
  %1495 = vmatmul.mubr.bf16.gmra.mrb[0].mxu0 %v301
  %v1496 = vpop.f32.mrb[0].mxu0
  %v1497 = vadd.f32 0.0, %v1496
  %v1498 = vpop.f32.mrb[0].mxu0
  %v1499 = vpop.f32.mrb[0].mxu0
  %v1500 = vadd.f32 0.0, %v1499
  %v1501 = vpop.f32.mrb[0].mxu0
  %1502 = vmatprep.mubr.bf16.mxu0 0
  %1503 = vmatmul.mubr.bf16.gmra.mrb[0].mxu0 %v302
  %v1504 = vpop.f32.mrb[0].mxu0
  %v1505 = vadd.f32 0.0, %v1504
  %v1506 = vpop.f32.mrb[0].mxu0
  %v1507 = vpop.f32.mrb[0].mxu0
  %v1508 = vadd.f32 0.0, %v1507
  %v1509 = vpop.f32.mrb[0].mxu0
  %1510 = vmatprep.mubr.bf16.mxu0 0
  %1511 = vmatmul.mubr.bf16.gmra.mrb[0].mxu0 %v303
  %v1512 = vpop.f32.mrb[0].mxu0
  %v1513 = vadd.f32 0.0, %v1512
  %v1514 = vpop.f32.mrb[0].mxu0
  %v1515 = vpop.f32.mrb[0].mxu0
  %v1516 = vadd.f32 0.0, %v1515
  %v1517 = vpop.f32.mrb[0].mxu0
  %1518 = vmatprep.mubr.bf16.mxu0 0
  %1519 = vmatmul.mubr.bf16.gmra.mrb[0].mxu0 %v304
  %v1520 = vpop.f32.mrb[0].mxu0
  %v1521 = vadd.f32 0.0, %v1520
  %v1522 = vpop.f32.mrb[0].mxu0
  %v1523 = vpop.f32.mrb[0].mxu0
  %v1524 = vadd.f32 0.0, %v1523
  %v1525 = vpop.f32.mrb[0].mxu0
  %1526 = vdwg.mxu0
  %v1527 = vpack.c.bf16 %v1468, %v1465
  %v1528 = vpack.c.bf16 %v1476, %v1473
  %v1529 = vpack.c.bf16 %v1484, %v1481
  %v1530 = vpack.c.bf16 %v1492, %v1489
  %v1531 = vpack.c.bf16 %v1500, %v1497
  %v1532 = vpack.c.bf16 %v1508, %v1505
  %v1533 = vpack.c.bf16 %v1516, %v1513
  %v1534 = vpack.c.bf16 %v1524, %v1521
  %v1535 = vld [vmem:[%s10] sm:$0xf]
  %v1536 = vld [vmem:[%s10 + $0x4] sm:$0xf]
  %v1537 = vld [vmem:[%s10 + $0x8] sm:$0xf]
  %v1538 = vld [vmem:[%s10 + $0xc] sm:$0xf]
  %v1539 = vld [vmem:[%s11] sm:$0x1]
  %v1541 = vlaneseq
  %v1542 = vshrl.u32 %v1541, 7
  %v1543 = vsub.s32 0, %v1542
  %v1544 = vrot.slane %v1539, %v1543
  %v1550 = vunpack.c.l.b16 %v1535
  %v1551 = vunpack.c.l.b16 %v1536
  %v1552 = vunpack.c.l.b16 %v1537
  %v1553 = vunpack.c.l.b16 %v1538
  %v1554 = vpack.c.b16 %v1551, %v1550
  %v1555 = vpack.c.b16 %v1553, %v1552
  %v1559 = vsel %vm482, %v1527, 0
  %v1562 = vsel %vm482, %v1528, 0
  %v1565 = vsel %vm482, %v1529, 0
  %v1568 = vsel %vm482, %v1530, 0
  %v1571 = vsel %vm482, %v1531, 0
  %v1574 = vsel %vm482, %v1532, 0
  %v1577 = vsel %vm482, %v1533, 0
  %v1580 = vsel %vm482, %v1534, 0
  %1582 = vmatprep.subr.bf16.mxu0 0
  %1583 = vmatpush1.bf16.msra.mxu0 %v1554
  %1584 = vmatprep.subr.bf16.mxu0 0
  %1585 = vmatpush1.bf16.msra.mxu0 %v1555
  %1586 = vmatprep.subr.bf16.mxu0 0
  %1587 = vmatpush1.bf16.msra.mxu0 0
  %1588 = vmatprep.subr.bf16.mxu0 0
  %1589 = vmatpush1.bf16.msra.mxu0 0
  %1590 = vmatprep.subr.bf16.mxu0 0
  %1591 = vmatpush1.bf16.msra.mxu0 0
  %1592 = vmatprep.subr.bf16.mxu0 0
  %1593 = vmatpush1.bf16.msra.mxu0 0
  %1594 = vmatprep.subr.bf16.mxu0 0
  %1595 = vmatpush1.bf16.msra.mxu0 0
  %1596 = vmatprep.subr.bf16.mxu0 0
  %1597 = vmatpush1.bf16.msra.mxu0 0
  %1598 = vmatprep.subr.bf16.mxu0 0
  %1599 = vmatpush1.bf16.msra.mxu0 0
  %1600 = vmatprep.subr.bf16.mxu0 0
  %1601 = vmatpush1.bf16.msra.mxu0 0
  %1602 = vmatprep.subr.bf16.mxu0 0
  %1603 = vmatpush1.bf16.msra.mxu0 0
  %1604 = vmatprep.subr.bf16.mxu0 0
  %1605 = vmatpush1.bf16.msra.mxu0 0
  %1606 = vmatprep.subr.bf16.mxu0 0
  %1607 = vmatpush1.bf16.msra.mxu0 0
  %1608 = vmatprep.subr.bf16.mxu0 0
  %1609 = vmatpush1.bf16.msra.mxu0 0
  %1610 = vmatprep.subr.bf16.mxu0 0
  %1611 = vmatpush1.bf16.msra.mxu0 0
  %1612 = vmatprep.subr.bf16.mxu0 0
  %1613 = vmatpush1.bf16.msra.mxu0 0
  %1614 = vmatprep.mubr.bf16.mxu0 0
  %1615 = vmatmul.mubr.bf16.gmra.mrb[0].mxu0 %v1559
  %v1616 = vpop.f32.mrb[0].mxu0
  %v1617 = vadd.f32 %v1544, %v1616
  %v1618 = vpop.f32.mrb[0].mxu0
  %v1619 = vpop.f32.mrb[0].mxu0
  %v1620 = vadd.f32 %v1544, %v1619
  %v1621 = vpop.f32.mrb[0].mxu0
  %1622 = vmatprep.mubr.bf16.mxu0 0
  %1623 = vmatmul.mubr.bf16.gmra.mrb[0].mxu0 %v1562
  %v1624 = vpop.f32.mrb[0].mxu0
  %v1625 = vadd.f32 %v1544, %v1624
  %v1626 = vpop.f32.mrb[0].mxu0
  %v1627 = vpop.f32.mrb[0].mxu0
  %v1628 = vadd.f32 %v1544, %v1627
  %v1629 = vpop.f32.mrb[0].mxu0
  %1630 = vmatprep.mubr.bf16.mxu0 0
  %1631 = vmatmul.mubr.bf16.gmra.mrb[0].mxu0 %v1565
  %v1632 = vpop.f32.mrb[0].mxu0
  %v1633 = vadd.f32 %v1544, %v1632
  %v1634 = vpop.f32.mrb[0].mxu0
  %v1635 = vpop.f32.mrb[0].mxu0
  %v1636 = vadd.f32 %v1544, %v1635
  %v1637 = vpop.f32.mrb[0].mxu0
  %1638 = vmatprep.mubr.bf16.mxu0 0
  %1639 = vmatmul.mubr.bf16.gmra.mrb[0].mxu0 %v1568
  %v1640 = vpop.f32.mrb[0].mxu0
  %v1641 = vadd.f32 %v1544, %v1640
  %v1642 = vpop.f32.mrb[0].mxu0
  %v1643 = vpop.f32.mrb[0].mxu0
  %v1644 = vadd.f32 %v1544, %v1643
  %v1645 = vpop.f32.mrb[0].mxu0
  %1646 = vmatprep.mubr.bf16.mxu0 0
  %1647 = vmatmul.mubr.bf16.gmra.mrb[0].mxu0 %v1571
  %v1648 = vpop.f32.mrb[0].mxu0
  %v1649 = vadd.f32 %v1544, %v1648
  %v1650 = vpop.f32.mrb[0].mxu0
  %v1651 = vpop.f32.mrb[0].mxu0
  %v1652 = vadd.f32 %v1544, %v1651
  %v1653 = vpop.f32.mrb[0].mxu0
  %1654 = vmatprep.mubr.bf16.mxu0 0
  %1655 = vmatmul.mubr.bf16.gmra.mrb[0].mxu0 %v1574
  %v1656 = vpop.f32.mrb[0].mxu0
  %v1657 = vadd.f32 %v1544, %v1656
  %v1658 = vpop.f32.mrb[0].mxu0
  %v1659 = vpop.f32.mrb[0].mxu0
  %v1660 = vadd.f32 %v1544, %v1659
  %v1661 = vpop.f32.mrb[0].mxu0
  %1662 = vmatprep.mubr.bf16.mxu0 0
  %1663 = vmatmul.mubr.bf16.gmra.mrb[0].mxu0 %v1577
  %v1664 = vpop.f32.mrb[0].mxu0
  %v1665 = vadd.f32 %v1544, %v1664
  %v1666 = vpop.f32.mrb[0].mxu0
  %v1667 = vpop.f32.mrb[0].mxu0
  %v1668 = vadd.f32 %v1544, %v1667
  %v1669 = vpop.f32.mrb[0].mxu0
  %1670 = vmatprep.mubr.bf16.mxu0 0
  %1671 = vmatmul.mubr.bf16.gmra.mrb[0].mxu0 %v1580
  %v1672 = vpop.f32.mrb[0].mxu0
  %v1673 = vadd.f32 %v1544, %v1672
  %v1674 = vpop.f32.mrb[0].mxu0
  %v1675 = vpop.f32.mrb[0].mxu0
  %v1676 = vadd.f32 %v1544, %v1675
  %v1677 = vpop.f32.mrb[0].mxu0
  %1678 = vdwg.mxu0
  %vm1679 = vcmp.ge.f32.partialorder %v1617, 0.0
  %vm1680 = vcmp.ge.f32.partialorder %v1620, 0.0
  %vm1681 = vcmp.ge.f32.partialorder %v1625, 0.0
  %vm1682 = vcmp.ge.f32.partialorder %v1628, 0.0
  %vm1683 = vcmp.ge.f32.partialorder %v1633, 0.0
  %vm1684 = vcmp.ge.f32.partialorder %v1636, 0.0
  %vm1685 = vcmp.ge.f32.partialorder %v1641, 0.0
  %vm1686 = vcmp.ge.f32.partialorder %v1644, 0.0
  %vm1687 = vcmp.ge.f32.partialorder %v1649, 0.0
  %vm1688 = vcmp.ge.f32.partialorder %v1652, 0.0
  %vm1689 = vcmp.ge.f32.partialorder %v1657, 0.0
  %vm1690 = vcmp.ge.f32.partialorder %v1660, 0.0
  %vm1691 = vcmp.ge.f32.partialorder %v1665, 0.0
  %vm1692 = vcmp.ge.f32.partialorder %v1668, 0.0
  %vm1693 = vcmp.ge.f32.partialorder %v1673, 0.0
  %vm1694 = vcmp.ge.f32.partialorder %v1676, 0.0
  %v1695 = vmul.f32 %v1617, 0.01
  %v1696 = vmul.f32 %v1620, 0.01
  %v1697 = vmul.f32 %v1625, 0.01
  %v1698 = vmul.f32 %v1628, 0.01
  %v1699 = vmul.f32 %v1633, 0.01
  %v1700 = vmul.f32 %v1636, 0.01
  %v1701 = vmul.f32 %v1641, 0.01
  %v1702 = vmul.f32 %v1644, 0.01
  %v1703 = vmul.f32 %v1649, 0.01
  %v1704 = vmul.f32 %v1652, 0.01
  %v1705 = vmul.f32 %v1657, 0.01
  %v1706 = vmul.f32 %v1660, 0.01
  %v1707 = vmul.f32 %v1665, 0.01
  %v1708 = vmul.f32 %v1668, 0.01
  %v1709 = vmul.f32 %v1673, 0.01
  %v1710 = vmul.f32 %v1676, 0.01
  %v1711 = vsel %vm1679, %v1617, %v1695
  %v1712 = vsel %vm1680, %v1620, %v1696
  %v1713 = vsel %vm1681, %v1625, %v1697
  %v1714 = vsel %vm1682, %v1628, %v1698
  %v1715 = vsel %vm1683, %v1633, %v1699
  %v1716 = vsel %vm1684, %v1636, %v1700
  %v1717 = vsel %vm1685, %v1641, %v1701
  %v1718 = vsel %vm1686, %v1644, %v1702
  %v1719 = vsel %vm1687, %v1649, %v1703
  %v1720 = vsel %vm1688, %v1652, %v1704
  %v1721 = vsel %vm1689, %v1657, %v1705
  %v1722 = vsel %vm1690, %v1660, %v1706
  %v1723 = vsel %vm1691, %v1665, %v1707
  %v1724 = vsel %vm1692, %v1668, %v1708
  %v1725 = vsel %vm1693, %v1673, %v1709
  %v1726 = vsel %vm1694, %v1676, %v1710
  %v1727 = vpack.c.bf16 %v1712, %v1711
  %v1728 = vpack.c.bf16 %v1714, %v1713
  %v1729 = vpack.c.bf16 %v1716, %v1715
  %v1730 = vpack.c.bf16 %v1718, %v1717
  %v1731 = vpack.c.bf16 %v1720, %v1719
  %v1732 = vpack.c.bf16 %v1722, %v1721
  %v1733 = vpack.c.bf16 %v1724, %v1723
  %v1734 = vpack.c.bf16 %v1726, %v1725
  %v1735 = vld [vmem:[%s12] sm:$0xf]
  %v1736 = vld [vmem:[%s12 + $0x4] sm:$0xf]
  %v1737 = vld [vmem:[%s13] sm:$0x1]
  %v1739 = vlaneseq
  %v1740 = vshrl.u32 %v1739, 7
  %v1741 = vsub.s32 0, %v1740
  %v1742 = vrot.slane %v1737, %v1741
  %v1746 = vunpack.c.l.b16 %v1735
  %v1747 = vunpack.c.l.b16 %v1736
  %v1748 = vpack.c.b16 %v1747, %v1746
  %v1751 = vsel %vm128, %v1727, 0
  %v1754 = vsel %vm128, %v1728, 0
  %v1757 = vsel %vm128, %v1729, 0
  %v1760 = vsel %vm128, %v1730, 0
  %v1763 = vsel %vm128, %v1731, 0
  %v1766 = vsel %vm128, %v1732, 0
  %v1769 = vsel %vm128, %v1733, 0
  %v1772 = vsel %vm128, %v1734, 0
  %1774 = vmatprep.subr.bf16.mxu0 0
  %1775 = vmatpush1.bf16.msra.mxu0 %v1748
  %1776 = vmatprep.subr.bf16.mxu0 0
  %1777 = vmatpush1.bf16.msra.mxu0 0
  %1778 = vmatprep.subr.bf16.mxu0 0
  %1779 = vmatpush1.bf16.msra.mxu0 0
  %1780 = vmatprep.subr.bf16.mxu0 0
  %1781 = vmatpush1.bf16.msra.mxu0 0
  %1782 = vmatprep.subr.bf16.mxu0 0
  %1783 = vmatpush1.bf16.msra.mxu0 0
  %1784 = vmatprep.subr.bf16.mxu0 0
  %1785 = vmatpush1.bf16.msra.mxu0 0
  %1786 = vmatprep.subr.bf16.mxu0 0
  %1787 = vmatpush1.bf16.msra.mxu0 0
  %1788 = vmatprep.subr.bf16.mxu0 0
  %1789 = vmatpush1.bf16.msra.mxu0 0
  %1790 = vmatprep.subr.bf16.mxu0 0
  %1791 = vmatpush1.bf16.msra.mxu0 0
  %1792 = vmatprep.subr.bf16.mxu0 0
  %1793 = vmatpush1.bf16.msra.mxu0 0
  %1794 = vmatprep.subr.bf16.mxu0 0
  %1795 = vmatpush1.bf16.msra.mxu0 0
  %1796 = vmatprep.subr.bf16.mxu0 0
  %1797 = vmatpush1.bf16.msra.mxu0 0
  %1798 = vmatprep.subr.bf16.mxu0 0
  %1799 = vmatpush1.bf16.msra.mxu0 0
  %1800 = vmatprep.subr.bf16.mxu0 0
  %1801 = vmatpush1.bf16.msra.mxu0 0
  %1802 = vmatprep.subr.bf16.mxu0 0
  %1803 = vmatpush1.bf16.msra.mxu0 0
  %1804 = vmatprep.subr.bf16.mxu0 0
  %1805 = vmatpush1.bf16.msra.mxu0 0
  %1806 = vmatprep.mubr.bf16.mxu0 0
  %1807 = vmatmul.mubr.bf16.gmra.mrb[0].mxu0 %v1751
  %v1808 = vpop.f32.mrb[0].mxu0
  %v1809 = vadd.f32 %v1742, %v1808
  %v1810 = vpop.f32.mrb[0].mxu0
  %v1811 = vpop.f32.mrb[0].mxu0
  %v1812 = vadd.f32 %v1742, %v1811
  %v1813 = vpop.f32.mrb[0].mxu0
  %1814 = vmatprep.mubr.bf16.mxu0 0
  %1815 = vmatmul.mubr.bf16.gmra.mrb[0].mxu0 %v1754
  %v1816 = vpop.f32.mrb[0].mxu0
  %v1817 = vadd.f32 %v1742, %v1816
  %v1818 = vpop.f32.mrb[0].mxu0
  %v1819 = vpop.f32.mrb[0].mxu0
  %v1820 = vadd.f32 %v1742, %v1819
  %v1821 = vpop.f32.mrb[0].mxu0
  %1822 = vmatprep.mubr.bf16.mxu0 0
  %1823 = vmatmul.mubr.bf16.gmra.mrb[0].mxu0 %v1757
  %v1824 = vpop.f32.mrb[0].mxu0
  %v1825 = vadd.f32 %v1742, %v1824
  %v1826 = vpop.f32.mrb[0].mxu0
  %v1827 = vpop.f32.mrb[0].mxu0
  %v1828 = vadd.f32 %v1742, %v1827
  %v1829 = vpop.f32.mrb[0].mxu0
  %1830 = vmatprep.mubr.bf16.mxu0 0
  %1831 = vmatmul.mubr.bf16.gmra.mrb[0].mxu0 %v1760
  %v1832 = vpop.f32.mrb[0].mxu0
  %v1833 = vadd.f32 %v1742, %v1832
  %v1834 = vpop.f32.mrb[0].mxu0
  %v1835 = vpop.f32.mrb[0].mxu0
  %v1836 = vadd.f32 %v1742, %v1835
  %v1837 = vpop.f32.mrb[0].mxu0
  %1838 = vmatprep.mubr.bf16.mxu0 0
  %1839 = vmatmul.mubr.bf16.gmra.mrb[0].mxu0 %v1763
  %v1840 = vpop.f32.mrb[0].mxu0
  %v1841 = vadd.f32 %v1742, %v1840
  %v1842 = vpop.f32.mrb[0].mxu0
  %v1843 = vpop.f32.mrb[0].mxu0
  %v1844 = vadd.f32 %v1742, %v1843
  %v1845 = vpop.f32.mrb[0].mxu0
  %1846 = vmatprep.mubr.bf16.mxu0 0
  %1847 = vmatmul.mubr.bf16.gmra.mrb[0].mxu0 %v1766
  %v1848 = vpop.f32.mrb[0].mxu0
  %v1849 = vadd.f32 %v1742, %v1848
  %v1850 = vpop.f32.mrb[0].mxu0
  %v1851 = vpop.f32.mrb[0].mxu0
  %v1852 = vadd.f32 %v1742, %v1851
  %v1853 = vpop.f32.mrb[0].mxu0
  %1854 = vmatprep.mubr.bf16.mxu0 0
  %1855 = vmatmul.mubr.bf16.gmra.mrb[0].mxu0 %v1769
  %v1856 = vpop.f32.mrb[0].mxu0
  %v1857 = vadd.f32 %v1742, %v1856
  %v1858 = vpop.f32.mrb[0].mxu0
  %v1859 = vpop.f32.mrb[0].mxu0
  %v1860 = vadd.f32 %v1742, %v1859
  %v1861 = vpop.f32.mrb[0].mxu0
  %1862 = vmatprep.mubr.bf16.mxu0 0
  %1863 = vmatmul.mubr.bf16.gmra.mrb[0].mxu0 %v1772
  %v1864 = vpop.f32.mrb[0].mxu0
  %v1865 = vadd.f32 %v1742, %v1864
  %v1866 = vpop.f32.mrb[0].mxu0
  %v1867 = vpop.f32.mrb[0].mxu0
  %v1868 = vadd.f32 %v1742, %v1867
  %v1869 = vpop.f32.mrb[0].mxu0
  %1870 = vdwg.mxu0
  %1871 = vst [vmem:[%s14] sm:$0xff] %v1809
  %1872 = vst [vmem:[%s14 + $0x8] sm:$0xff] %v1812
  %1873 = vst [vmem:[%s14 + $0x10] sm:$0xff] %v1817
  %1874 = vst [vmem:[%s14 + $0x18] sm:$0xff] %v1820
  %1875 = vst [vmem:[%s14 + $0x20] sm:$0xff] %v1825
  %1876 = vst [vmem:[%s14 + $0x28] sm:$0xff] %v1828
  %1877 = vst [vmem:[%s14 + $0x30] sm:$0xff] %v1833
  %1878 = vst [vmem:[%s14 + $0x38] sm:$0xff] %v1836
  %1879 = vst [vmem:[%s14 + $0x40] sm:$0xff] %v1841
  %1880 = vst [vmem:[%s14 + $0x48] sm:$0xff] %v1844
  %1881 = vst [vmem:[%s14 + $0x50] sm:$0xff] %v1849
  %1882 = vst [vmem:[%s14 + $0x58] sm:$0xff] %v1852
  %1883 = vst [vmem:[%s14 + $0x60] sm:$0xff] %v1857
  %1884 = vst [vmem:[%s14 + $0x68] sm:$0xff] %v1860
  %1885 = vst [vmem:[%s14 + $0x70] sm:$0xff] %v1865
  %1886 = vst [vmem:[%s14 + $0x78] sm:$0xff] %v1868
  // Predicated region
  $region58: #{meshnet_forward.1} parent=0 // pred_check
    _
  $region59: #{meshnet_forward.1} parent=0 // pred_check_branch
    %1888 = sbr.rel (0) target = $region61
  $region60: #{meshnet_forward.1} parent=0 // pred_region
    _
  $region61: #{meshnet_forward.1} parent=0 // pred_fallthru
    _
  // Predicated region
  $region62: #{meshnet_forward.1} parent=0 // pred_check
    _
  $region63: #{meshnet_forward.1} parent=0 // pred_check_branch
    %1890 = sbr.rel (0) target = $region65
  $region64: #{meshnet_forward.1} parent=0 // pred_region
    _
  $region65: #{meshnet_forward.1} parent=0 // pred_fallthru
    _

</llo_original>
